<compile_context>
chip_gen: v5e
topology: v5e:2x2
jax: 0.10.0
libtpu: 0.0.40
codegen_flags: <defaults>
</compile_context>

<pallas_src>
import numpy as np
import jax
import jax.numpy as jnp
from jax import lax
from jax.experimental import pallas as pl
from jax.experimental.pallas import tpu as pltpu

_BN_EPS = 1e-5
_HIGHEST = lax.Precision.HIGHEST


# ------------------- separable upsample matrices (align_corners=True) -------------------
def _interp_matrix(n_in: int, n_out: int) -> np.ndarray:
    """Interpolation matrix reproducing nn.Upsample(mode='bilinear', align_corners=True)."""
    if n_in == 1:
        return np.ones((n_out, 1), np.float32)
    src = np.arange(n_out, dtype=np.float64) * (n_in - 1) / (n_out - 1)
    lo = np.clip(np.floor(src).astype(np.int64), 0, n_in - 2)
    frac = src - lo
    m = np.zeros((n_out, n_in), np.float64)
    m[np.arange(n_out), lo] += 1.0 - frac
    m[np.arange(n_out), lo + 1] += frac
    return m.astype(np.float32)


# ------------------- fused kernel: concat + (conv3x3 -> BN -> ReLU) x2 -------------------
def _make_concat_convblock_kernel(C1, Cx, Cmid, Cout, W2, HW2, PAD):
    Cin = C1 + Cx
    HALO = W2 + 1                      # columns actually read outside the interior
    taps = [(dy, dx) for dy in range(3) for dx in range(3)]

    def kernel(x1_ref, up_ref, w1_ref, b1_ref, w2_ref, b2_ref, out_ref, zext, hext):
        # Re-zero ONLY the halo columns the shifted windows read (W2+1 per side).
        # Done every step so correctness does not depend on which TensorCore
        # ran program_id==0 when the "parallel" grid axis is sharded.
        zext[:, PAD - HALO:PAD] = jnp.zeros((Cin, HALO), jnp.bfloat16)
        zext[:, PAD + HW2:PAD + HW2 + HALO] = jnp.zeros((Cin, HALO), jnp.bfloat16)
        hext[:, PAD - HALO:PAD] = jnp.zeros((Cmid, HALO), jnp.bfloat16)
        hext[:, PAD + HW2:PAD + HW2 + HALO] = jnp.zeros((Cmid, HALO), jnp.bfloat16)

        # torch.cat([x1, up(x)], dim=1), written straight into the halo buffer.
        zext[0:C1, PAD:PAD + HW2] = x1_ref[0]
        zext[C1:Cin, PAD:PAD + HW2] = up_ref[0]

        # Lane-validity masks for the flattened-spatial shift trick
        # (row out-of-range is handled by the zero halos).
        col = lax.broadcasted_iota(jnp.int32, (1, HW2), 1) % W2
        not_first = col != 0           # taps with dx == 0 read previous row's last col
        not_last = col != W2 - 1       # taps with dx == 2 read next row's first col

        def conv3x3(src, w_ref, c_in, c_out):
            # Hoisted broadcasts (JAX does not CSE broadcast_in_dim).
            ml = jnp.broadcast_to(not_first, (c_in, HW2))
            mr = jnp.broadcast_to(not_last, (c_in, HW2))
            zero = jnp.zeros((c_in, HW2), jnp.bfloat16)
            acc = jnp.zeros((c_out, HW2), jnp.float32)
            # Tap accumulation: no im2col materialization, 9 bf16 MXU matmuls
            # with f32 accumulation.
            for t, (dy, dx) in enumerate(taps):
                off = (dy - 1) * W2 + (dx - 1)
                win = src[:, PAD + off:PAD + off + HW2]          # (c_in, HW2) bf16
                if dx == 0:
                    win = jnp.where(ml, win, zero)
                elif dx == 2:
                    win = jnp.where(mr, win, zero)
                acc = acc + jnp.dot(w_ref[t], win, preferred_element_type=jnp.float32)
            return acc

        # conv1: 3x3, pad=1, bias=False -> folded BN (scale in weights) -> ReLU
        a1 = conv3x3(zext, w1_ref, Cin, Cmid)
        h1 = jnp.maximum(a1 + b1_ref[...], 0.0)                  # f32 elementwise
        hext[:, PAD:PAD + HW2] = h1.astype(jnp.bfloat16)

        # conv2: 3x3, pad=1, bias=False -> folded BN -> ReLU
        a2 = conv3x3(hext, w2_ref, Cmid, Cout)
        out_ref[0] = jnp.maximum(a2 + b2_ref[...], 0.0)

    return kernel


def _padded_vmem_bytes(shape, dtype):
    """Rough VMEM footprint of one buffer with (sublane, lane) tiling padding."""
    it = jnp.dtype(dtype).itemsize
    sub = 8 if it == 4 else (16 if it == 2 else 32)
    dims = list(shape)
    while len(dims) < 2:
        dims = [1] + dims
    dims[-1] = -(-dims[-1] // 128) * 128
    dims[-2] = -(-dims[-2] // sub) * sub
    n = 1
    for d in dims:
        n *= int(d)
    return n * it


# ------------------- Up.forward -------------------
def up_forward(x, x1, params):
    B, Cx, H, W = x.shape
    H2, W2 = 2 * H, 2 * W
    diff_y = x1.shape[2] - H2
    diff_x = x1.shape[3] - W2
    # TODO(synk): negative diffX/diffY (F.pad cropping path) is not implemented.
    if diff_y or diff_x:
        x1 = jnp.pad(x1, ((0, 0), (0, 0),
                          (diff_y // 2, diff_y - diff_y // 2),
                          (diff_x // 2, diff_x - diff_x // 2)))
    C1 = x1.shape[1]
    Cin = C1 + Cx
    w1, w2 = params["w1"], params["w2"]
    Cmid, Cout = w1.shape[3], w2.shape[3]
    HW2 = H2 * W2
    PAD = ((W2 + 1 + 127) // 128) * 128     # halo >= W2+1, 128-aligned interior stores

    # --- separable bilinear 2x upsample (align_corners=True): two tiny einsums ---
    mh = jnp.asarray(_interp_matrix(H, H2))          # (2H, H)
    mw = jnp.asarray(_interp_matrix(W, W2))          # (2W, W)
    t = jnp.einsum('oh,bchw->bcow', mh, x, precision=_HIGHEST)
    up = jnp.einsum('pw,bcow->bcop', mw, t, precision=_HIGHEST)     # (B, Cx, H2, W2)
    up_flat = up.reshape(B, Cx, HW2).astype(jnp.bfloat16)
    x1_flat = x1.reshape(B, C1, HW2).astype(jnp.bfloat16)

    # --- per-tap conv weights, BN scale folded in, bf16 MXU operands ---
    w1_taps = jnp.transpose(w1, (0, 1, 3, 2)).reshape(9, Cmid, Cin)   # [tap, cm, ci]
    w1_taps = (w1_taps * params["s1"][None, :, None]).astype(jnp.bfloat16)
    w2_taps = jnp.transpose(w2, (0, 1, 3, 2)).reshape(9, Cout, Cmid)
    w2_taps = (w2_taps * params["s2"][None, :, None]).astype(jnp.bfloat16)
    b1 = params["b1"].reshape(Cmid, 1).astype(jnp.float32)
    b2 = params["b2"].reshape(Cout, 1).astype(jnp.float32)

    # --- VMEM budget: double-buffered blocks + scratch + headroom ---
    block_bytes = (
        _padded_vmem_bytes((1, C1, HW2), jnp.bfloat16) +
        _padded_vmem_bytes((1, Cx, HW2), jnp.bfloat16) +
        _padded_vmem_bytes((9, Cmid, Cin), jnp.bfloat16) +
        _padded_vmem_bytes((Cmid, 1), jnp.float32) +
        _padded_vmem_bytes((9, Cout, Cmid), jnp.bfloat16) +
        _padded_vmem_bytes((Cout, 1), jnp.float32) +
        _padded_vmem_bytes((1, Cout, HW2), jnp.float32)
    )
    scratch_bytes = (
        _padded_vmem_bytes((Cin, HW2 + 2 * PAD), jnp.bfloat16) +
        _padded_vmem_bytes((Cmid, HW2 + 2 * PAD), jnp.bfloat16)
    )
    vmem_limit = int(2 * block_bytes + scratch_bytes + (4 << 20))

    kernel = _make_concat_convblock_kernel(C1, Cx, Cmid, Cout, W2, HW2, PAD)
    y = pl.pallas_call(
        kernel,
        out_shape=jax.ShapeDtypeStruct((B, Cout, HW2), jnp.float32),
        grid=(B,),
        in_specs=[
            pl.BlockSpec((1, C1, HW2), lambda b: (b, 0, 0)),
            pl.BlockSpec((1, Cx, HW2), lambda b: (b, 0, 0)),
            pl.BlockSpec((9, Cmid, Cin), lambda b: (0, 0, 0)),
            pl.BlockSpec((Cmid, 1), lambda b: (0, 0)),
            pl.BlockSpec((9, Cout, Cmid), lambda b: (0, 0, 0)),
            pl.BlockSpec((Cout, 1), lambda b: (0, 0)),
        ],
        out_specs=pl.BlockSpec((1, Cout, HW2), lambda b: (b, 0, 0)),
        scratch_shapes=[
            pltpu.VMEM((Cin, HW2 + 2 * PAD), jnp.bfloat16),   # concat input + zero halo
            pltpu.VMEM((Cmid, HW2 + 2 * PAD), jnp.bfloat16),  # conv1 activations + halo
        ],
        compiler_params=pltpu.CompilerParams(
            dimension_semantics=("parallel",),
            vmem_limit_bytes=vmem_limit),
    )(x1_flat, up_flat, w1_taps, b1, w2_taps, b2)
    return y.reshape(B, Cout, H2, W2)


# ------------------- deterministic parameter init -------------------
def init_params(key, channel_in, channel_out):
    cmid = channel_in // 2
    ks = jax.random.split(key, 10)
    w1 = 0.1 * jax.random.normal(ks[0], (3, 3, channel_in, cmid), jnp.float32)   # HWIO
    g1 = 1.0 + 0.1 * jax.random.normal(ks[1], (cmid,), jnp.float32)
    be1 = 0.1 * jax.random.normal(ks[2], (cmid,), jnp.float32)
    rm1 = 0.1 * jax.random.normal(ks[3], (cmid,), jnp.float32)
    rv1 = 0.5 + jax.random.uniform(ks[4], (cmid,), jnp.float32)
    w2 = 0.1 * jax.random.normal(ks[5], (3, 3, cmid, channel_out), jnp.float32)
    g2 = 1.0 + 0.1 * jax.random.normal(ks[6], (channel_out,), jnp.float32)
    be2 = 0.1 * jax.random.normal(ks[7], (channel_out,), jnp.float32)
    rm2 = 0.1 * jax.random.normal(ks[8], (channel_out,), jnp.float32)
    rv2 = 0.5 + jax.random.uniform(ks[9], (channel_out,), jnp.float32)
    # fold eval-mode BatchNorm into scale/shift applied to the (bias-free) conv output
    s1 = g1 / jnp.sqrt(rv1 + _BN_EPS)
    b1 = be1 - rm1 * s1
    s2 = g2 / jnp.sqrt(rv2 + _BN_EPS)
    b2 = be2 - rm2 * s2
    return dict(w1=w1, s1=s1, b1=b1, w2=w2, s2=s2, b2=b2,
                g1=g1, be1=be1, rm1=rm1, rv1=rv1,
                g2=g2, be2=be2, rm2=rm2, rv2=rv2)


# ------------------- pure-JAX reference (for correctness check) -------------------
def up_forward_reference(x, x1, params):
    B, C, H, W = x.shape
    mh = jnp.asarray(_interp_matrix(H, 2 * H))
    mw = jnp.asarray(_interp_matrix(W, 2 * W))
    t = jnp.einsum('oh,bchw->bcow', mh, x, precision=_HIGHEST)
    up = jnp.einsum('pw,bcow->bcop', mw, t, precision=_HIGHEST)
    diff_y = x1.shape[2] - up.shape[2]
    diff_x = x1.shape[3] - up.shape[3]
    x1p = jnp.pad(x1, ((0, 0), (0, 0),
                       (diff_y // 2, diff_y - diff_y // 2),
                       (diff_x // 2, diff_x - diff_x // 2)))
    xin = jnp.concatenate([x1p, up], axis=1)

    def conv_bn_relu(z, w_hwio, g, be, rm, rv):
        w_oihw = jnp.transpose(w_hwio, (3, 2, 0, 1))
        z = lax.conv_general_dilated(z, w_oihw, (1, 1), 'SAME',
                                     dimension_numbers=('NCHW', 'OIHW', 'NCHW'),
                                     precision=_HIGHEST)
        z = (z - rm[None, :, None, None]) / jnp.sqrt(rv[None, :, None, None] + _BN_EPS)
        z = z * g[None, :, None, None] + be[None, :, None, None]
        return jnp.maximum(z, 0.0)

    h = conv_bn_relu(xin, params["w1"], params["g1"], params["be1"],
                     params["rm1"], params["rv1"])
    return conv_bn_relu(h, params["w2"], params["g2"], params["be2"],
                        params["rm2"], params["rv2"])


if __name__ == "__main__":
    key = jax.random.PRNGKey(0)
    k_x, k_x1, k_p = jax.random.split(key, 3)

    B, Cx, H, W = 2, 8, 8, 8            # x: low-res decoder features (upsampled 2x)
    C1 = 8                              # x1: skip connection at 2x resolution
    channel_in = Cx + C1                # channels after torch.cat([x1, up(x)], dim=1)
    channel_out = 8

    x = jax.random.normal(k_x, (B, Cx, H, W), jnp.float32)
    x1 = jax.random.normal(k_x1, (B, C1, 2 * H, 2 * W), jnp.float32)
    params = init_params(k_p, channel_in, channel_out)

    out = jax.block_until_ready(up_forward(x, x1, params))
    ref = jax.block_until_ready(up_forward_reference(x, x1, params))

    assert out.shape == (B, channel_out, 2 * H, 2 * W), out.shape
    err = np.max(np.abs(np.asarray(out) - np.asarray(ref)))
    # Kernel uses bf16 matmul operands / bf16 inter-conv activations with f32
    # accumulation; tolerance sized for that against an f32-HIGHEST reference.
    if not np.allclose(np.asarray(out), np.asarray(ref), atol=5e-2, rtol=5e-2):
        raise AssertionError(f"mismatch vs reference, max abs err = {err}")
    print("KERNEL_OK")
</pallas_src>

<mosaic_0001>
module attributes {stable_mosaic.version = 11 : i64} {
  func.func @kernel(%arg0: i32, %arg1: memref<1x8x256xbf16, #tpu.memory_space<vmem>>, %arg2: memref<1x8x256xbf16, #tpu.memory_space<vmem>>, %arg3: memref<9x8x16xbf16, #tpu.memory_space<vmem>>, %arg4: memref<8x1xf32, #tpu.memory_space<vmem>>, %arg5: memref<9x8x8xbf16, #tpu.memory_space<vmem>>, %arg6: memref<8x1xf32, #tpu.memory_space<vmem>>, %arg7: memref<1x8x256xf32, #tpu.memory_space<vmem>>, %arg8: memref<16x512xbf16, #tpu.memory_space<vmem>>, %arg9: memref<8x512xbf16, #tpu.memory_space<vmem>>) attributes {dimension_semantics = [#tpu.dimension_semantics<parallel>], iteration_bounds = array<i64: 2>, scalar_prefetch = 0 : i64, scratch_operands = 2 : i64, tpu.core_type = #tpu.core_type<tc>, window_params = [{transform_indices = @transform_0, window_bounds = array<i64: 1, 8, 256>}, {transform_indices = @transform_1, window_bounds = array<i64: 1, 8, 256>}, {pipeline_mode = #tpu.pipeline_mode<synchronous>, transform_indices = @transform_2, window_bounds = array<i64: 9, 8, 16>}, {pipeline_mode = #tpu.pipeline_mode<synchronous>, transform_indices = @transform_3, window_bounds = array<i64: 8, 1>}, {pipeline_mode = #tpu.pipeline_mode<synchronous>, transform_indices = @transform_4, window_bounds = array<i64: 9, 8, 8>}, {pipeline_mode = #tpu.pipeline_mode<synchronous>, transform_indices = @transform_5, window_bounds = array<i64: 8, 1>}, {transform_indices = @transform_6, window_bounds = array<i64: 1, 8, 256>}]} {
    %cst = arith.constant 0.000000e+00 : bf16
    %0 = vector.broadcast %cst : bf16 to vector<16x17xbf16>
    %c0 = arith.constant 0 : index
    %c111 = arith.constant 111 : index
    %1 = vector.load %arg8[%c0, %c111] : memref<16x512xbf16, #tpu.memory_space<vmem>>, vector<16x17xbf16>
    tpu.vector_store %arg8[%c0, %c111], %0 {strides = array<i32>} : memref<16x512xbf16, #tpu.memory_space<vmem>>, vector<16x17xbf16>,
    %cst_0 = arith.constant 0.000000e+00 : bf16
    %2 = vector.broadcast %cst_0 : bf16 to vector<16x17xbf16>
    %c0_1 = arith.constant 0 : index
    %c384 = arith.constant 384 : index
    %3 = vector.load %arg8[%c0_1, %c384] : memref<16x512xbf16, #tpu.memory_space<vmem>>, vector<16x17xbf16>
    tpu.vector_store %arg8[%c0_1, %c384], %2 {strides = array<i32>} : memref<16x512xbf16, #tpu.memory_space<vmem>>, vector<16x17xbf16>,
    %cst_2 = arith.constant 0.000000e+00 : bf16
    %4 = vector.broadcast %cst_2 : bf16 to vector<8x17xbf16>
    %c0_3 = arith.constant 0 : index
    %c111_4 = arith.constant 111 : index
    %5 = vector.load %arg9[%c0_3, %c111_4] : memref<8x512xbf16, #tpu.memory_space<vmem>>, vector<8x17xbf16>
    tpu.vector_store %arg9[%c0_3, %c111_4], %4 {strides = array<i32>} : memref<8x512xbf16, #tpu.memory_space<vmem>>, vector<8x17xbf16>,
    %cst_5 = arith.constant 0.000000e+00 : bf16
    %6 = vector.broadcast %cst_5 : bf16 to vector<8x17xbf16>
    %c0_6 = arith.constant 0 : index
    %c384_7 = arith.constant 384 : index
    %7 = vector.load %arg9[%c0_6, %c384_7] : memref<8x512xbf16, #tpu.memory_space<vmem>>, vector<8x17xbf16>
    tpu.vector_store %arg9[%c0_6, %c384_7], %6 {strides = array<i32>} : memref<8x512xbf16, #tpu.memory_space<vmem>>, vector<8x17xbf16>,
    %c0_8 = arith.constant 0 : index
    %c0_9 = arith.constant 0 : index
    %c0_10 = arith.constant 0 : index
    %8 = vector.load %arg1[%c0_8, %c0_9, %c0_10] : memref<1x8x256xbf16, #tpu.memory_space<vmem>>, vector<1x8x256xbf16>
    %9 = vector.shape_cast %8 : vector<1x8x256xbf16> to vector<8x256xbf16>
    %c0_11 = arith.constant 0 : index
    %c128 = arith.constant 128 : index
    %10 = vector.load %arg8[%c0_11, %c128] : memref<16x512xbf16, #tpu.memory_space<vmem>>, vector<8x256xbf16>
    tpu.vector_store %arg8[%c0_11, %c128], %9 {strides = array<i32>} : memref<16x512xbf16, #tpu.memory_space<vmem>>, vector<8x256xbf16>,
    %c0_12 = arith.constant 0 : index
    %c0_13 = arith.constant 0 : index
    %c0_14 = arith.constant 0 : index
    %11 = vector.load %arg2[%c0_12, %c0_13, %c0_14] : memref<1x8x256xbf16, #tpu.memory_space<vmem>>, vector<1x8x256xbf16>
    %12 = vector.shape_cast %11 : vector<1x8x256xbf16> to vector<8x256xbf16>
    %c8 = arith.constant 8 : index
    %c128_15 = arith.constant 128 : index
    %13 = vector.load %arg8[%c8, %c128_15] : memref<16x512xbf16, #tpu.memory_space<vmem>>, vector<8x256xbf16>
    tpu.vector_store %arg8[%c8, %c128_15], %12 {strides = array<i32>} : memref<16x512xbf16, #tpu.memory_space<vmem>>, vector<8x256xbf16>,
    %14 = tpu.iota {dimensions = array<i32: 1>} : vector<1x256xi32>
    %c16_i32 = arith.constant 16 : i32
    %c0_i32 = arith.constant 0 : i32
    %15 = arith.cmpi eq, %c16_i32, %c0_i32 : i32
    %c1_i32 = arith.constant 1 : i32
    %16 = arith.select %15, %c1_i32, %c16_i32 : i32
    %17 = vector.broadcast %16 : i32 to vector<1x256xi32>
    %18 = arith.remsi %14, %17 : vector<1x256xi32>
    %c0_i32_16 = arith.constant 0 : i32
    %19 = vector.broadcast %c0_i32_16 : i32 to vector<1x256xi32>
    %20 = arith.cmpi ne, %18, %19 : vector<1x256xi32>
    %c0_i32_17 = arith.constant 0 : i32
    %21 = vector.broadcast %c0_i32_17 : i32 to vector<1x256xi32>
    %22 = arith.cmpi slt, %18, %21 : vector<1x256xi32>
    %c0_i32_18 = arith.constant 0 : i32
    %23 = arith.cmpi slt, %16, %c0_i32_18 : i32
    %24 = vector.broadcast %23 : i1 to vector<1x256xi1>
    %25 = vector.broadcast %24 : vector<1x256xi1> to vector<1x256xi1>
    %26 = arith.xori %22, %25 : vector<1x256xi1>
    %27 = arith.andi %26, %20 : vector<1x256xi1>
    %28 = vector.broadcast %16 : i32 to vector<1x256xi32>
    %29 = arith.addi %18, %28 : vector<1x256xi32>
    %30 = arith.select %27, %29, %18 : vector<1x256xi1>, vector<1x256xi32>
    %c0_i32_19 = arith.constant 0 : i32
    %31 = vector.broadcast %c0_i32_19 : i32 to vector<1x256xi32>
    %32 = arith.cmpi ne, %30, %31 : vector<1x256xi32>
    %c15_i32 = arith.constant 15 : i32
    %33 = vector.broadcast %c15_i32 : i32 to vector<1x256xi32>
    %34 = arith.cmpi ne, %30, %33 : vector<1x256xi32>
    %35 = vector.shape_cast %32 : vector<1x256xi1> to vector<1x256xi1>
    %36 = vector.broadcast %35 : vector<1x256xi1> to vector<16x256xi1>
    %37 = vector.shape_cast %34 : vector<1x256xi1> to vector<1x256xi1>
    %38 = vector.broadcast %37 : vector<1x256xi1> to vector<16x256xi1>
    %cst_20 = arith.constant 0.000000e+00 : bf16
    %39 = vector.broadcast %cst_20 : bf16 to vector<16x256xbf16>
    %cst_21 = arith.constant 0.000000e+00 : f32
    %40 = vector.broadcast %cst_21 : f32 to vector<8x256xf32>
    %c0_22 = arith.constant 0 : index
    %c111_23 = arith.constant 111 : index
    %41 = vector.load %arg8[%c0_22, %c111_23] : memref<16x512xbf16, #tpu.memory_space<vmem>>, vector<16x256xbf16>
    %42 = arith.select %36, %41, %39 : vector<16x256xi1>, vector<16x256xbf16>
    %c0_24 = arith.constant 0 : index
    %c0_25 = arith.constant 0 : index
    %c0_26 = arith.constant 0 : index
    %43 = vector.load %arg3[%c0_24, %c0_25, %c0_26] : memref<9x8x16xbf16, #tpu.memory_space<vmem>>, vector<1x8x16xbf16>
    %44 = vector.shape_cast %43 : vector<1x8x16xbf16> to vector<8x16xbf16>
    %cst_27 = arith.constant dense<0.000000e+00> : vector<8x256xf32>
    %45 = tpu.matmul %44, %42, %cst_27 {dimension_numbers = #tpu.dot_dimension_numbers<[1], [0], [0], [1], [0, 0, 1, 1], [], []>} : vector<8x16xbf16>, vector<16x256xbf16>, vector<8x256xf32> -> vector<8x256xf32>
    %46 = arith.addf %40, %45 : vector<8x256xf32>
    %c0_28 = arith.constant 0 : index
    %c112 = arith.constant 112 : index
    %47 = vector.load %arg8[%c0_28, %c112] : memref<16x512xbf16, #tpu.memory_space<vmem>>, vector<16x256xbf16>
    %c1 = arith.constant 1 : index
    %c0_29 = arith.constant 0 : index
    %c0_30 = arith.constant 0 : index
    %48 = vector.load %arg3[%c1, %c0_29, %c0_30] : memref<9x8x16xbf16, #tpu.memory_space<vmem>>, vector<1x8x16xbf16>
    %49 = vector.shape_cast %48 : vector<1x8x16xbf16> to vector<8x16xbf16>
    %cst_31 = arith.constant dense<0.000000e+00> : vector<8x256xf32>
    %50 = tpu.matmul %49, %47, %cst_31 {dimension_numbers = #tpu.dot_dimension_numbers<[1], [0], [0], [1], [0, 0, 1, 1], [], []>} : vector<8x16xbf16>, vector<16x256xbf16>, vector<8x256xf32> -> vector<8x256xf32>
    %51 = arith.addf %46, %50 : vector<8x256xf32>
    %c0_32 = arith.constant 0 : index
    %c113 = arith.constant 113 : index
    %52 = vector.load %arg8[%c0_32, %c113] : memref<16x512xbf16, #tpu.memory_space<vmem>>, vector<16x256xbf16>
    %53 = arith.select %38, %52, %39 : vector<16x256xi1>, vector<16x256xbf16>
    %c2 = arith.constant 2 : index
    %c0_33 = arith.constant 0 : index
    %c0_34 = arith.constant 0 : index
    %54 = vector.load %arg3[%c2, %c0_33, %c0_34] : memref<9x8x16xbf16, #tpu.memory_space<vmem>>, vector<1x8x16xbf16>
    %55 = vector.shape_cast %54 : vector<1x8x16xbf16> to vector<8x16xbf16>
    %cst_35 = arith.constant dense<0.000000e+00> : vector<8x256xf32>
    %56 = tpu.matmul %55, %53, %cst_35 {dimension_numbers = #tpu.dot_dimension_numbers<[1], [0], [0], [1], [0, 0, 1, 1], [], []>} : vector<8x16xbf16>, vector<16x256xbf16>, vector<8x256xf32> -> vector<8x256xf32>
    %57 = arith.addf %51, %56 : vector<8x256xf32>
    %c0_36 = arith.constant 0 : index
    %c127 = arith.constant 127 : index
    %58 = vector.load %arg8[%c0_36, %c127] : memref<16x512xbf16, #tpu.memory_space<vmem>>, vector<16x256xbf16>
    %59 = arith.select %36, %58, %39 : vector<16x256xi1>, vector<16x256xbf16>
    %c3 = arith.constant 3 : index
    %c0_37 = arith.constant 0 : index
    %c0_38 = arith.constant 0 : index
    %60 = vector.load %arg3[%c3, %c0_37, %c0_38] : memref<9x8x16xbf16, #tpu.memory_space<vmem>>, vector<1x8x16xbf16>
    %61 = vector.shape_cast %60 : vector<1x8x16xbf16> to vector<8x16xbf16>
    %cst_39 = arith.constant dense<0.000000e+00> : vector<8x256xf32>
    %62 = tpu.matmul %61, %59, %cst_39 {dimension_numbers = #tpu.dot_dimension_numbers<[1], [0], [0], [1], [0, 0, 1, 1], [], []>} : vector<8x16xbf16>, vector<16x256xbf16>, vector<8x256xf32> -> vector<8x256xf32>
    %63 = arith.addf %57, %62 : vector<8x256xf32>
    %c0_40 = arith.constant 0 : index
    %c128_41 = arith.constant 128 : index
    %64 = vector.load %arg8[%c0_40, %c128_41] : memref<16x512xbf16, #tpu.memory_space<vmem>>, vector<16x256xbf16>
    %c4 = arith.constant 4 : index
    %c0_42 = arith.constant 0 : index
    %c0_43 = arith.constant 0 : index
    %65 = vector.load %arg3[%c4, %c0_42, %c0_43] : memref<9x8x16xbf16, #tpu.memory_space<vmem>>, vector<1x8x16xbf16>
    %66 = vector.shape_cast %65 : vector<1x8x16xbf16> to vector<8x16xbf16>
    %cst_44 = arith.constant dense<0.000000e+00> : vector<8x256xf32>
    %67 = tpu.matmul %66, %64, %cst_44 {dimension_numbers = #tpu.dot_dimension_numbers<[1], [0], [0], [1], [0, 0, 1, 1], [], []>} : vector<8x16xbf16>, vector<16x256xbf16>, vector<8x256xf32> -> vector<8x256xf32>
    %68 = arith.addf %63, %67 : vector<8x256xf32>
    %c0_45 = arith.constant 0 : index
    %c129 = arith.constant 129 : index
    %69 = vector.load %arg8[%c0_45, %c129] : memref<16x512xbf16, #tpu.memory_space<vmem>>, vector<16x256xbf16>
    %70 = arith.select %38, %69, %39 : vector<16x256xi1>, vector<16x256xbf16>
    %c5 = arith.constant 5 : index
    %c0_46 = arith.constant 0 : index
    %c0_47 = arith.constant 0 : index
    %71 = vector.load %arg3[%c5, %c0_46, %c0_47] : memref<9x8x16xbf16, #tpu.memory_space<vmem>>, vector<1x8x16xbf16>
    %72 = vector.shape_cast %71 : vector<1x8x16xbf16> to vector<8x16xbf16>
    %cst_48 = arith.constant dense<0.000000e+00> : vector<8x256xf32>
    %73 = tpu.matmul %72, %70, %cst_48 {dimension_numbers = #tpu.dot_dimension_numbers<[1], [0], [0], [1], [0, 0, 1, 1], [], []>} : vector<8x16xbf16>, vector<16x256xbf16>, vector<8x256xf32> -> vector<8x256xf32>
    %74 = arith.addf %68, %73 : vector<8x256xf32>
    %c0_49 = arith.constant 0 : index
    %c143 = arith.constant 143 : index
    %75 = vector.load %arg8[%c0_49, %c143] : memref<16x512xbf16, #tpu.memory_space<vmem>>, vector<16x256xbf16>
    %76 = arith.select %36, %75, %39 : vector<16x256xi1>, vector<16x256xbf16>
    %c6 = arith.constant 6 : index
    %c0_50 = arith.constant 0 : index
    %c0_51 = arith.constant 0 : index
    %77 = vector.load %arg3[%c6, %c0_50, %c0_51] : memref<9x8x16xbf16, #tpu.memory_space<vmem>>, vector<1x8x16xbf16>
    %78 = vector.shape_cast %77 : vector<1x8x16xbf16> to vector<8x16xbf16>
    %cst_52 = arith.constant dense<0.000000e+00> : vector<8x256xf32>
    %79 = tpu.matmul %78, %76, %cst_52 {dimension_numbers = #tpu.dot_dimension_numbers<[1], [0], [0], [1], [0, 0, 1, 1], [], []>} : vector<8x16xbf16>, vector<16x256xbf16>, vector<8x256xf32> -> vector<8x256xf32>
    %80 = arith.addf %74, %79 : vector<8x256xf32>
    %c0_53 = arith.constant 0 : index
    %c144 = arith.constant 144 : index
    %81 = vector.load %arg8[%c0_53, %c144] : memref<16x512xbf16, #tpu.memory_space<vmem>>, vector<16x256xbf16>
    %c7 = arith.constant 7 : index
    %c0_54 = arith.constant 0 : index
    %c0_55 = arith.constant 0 : index
    %82 = vector.load %arg3[%c7, %c0_54, %c0_55] : memref<9x8x16xbf16, #tpu.memory_space<vmem>>, vector<1x8x16xbf16>
    %83 = vector.shape_cast %82 : vector<1x8x16xbf16> to vector<8x16xbf16>
    %cst_56 = arith.constant dense<0.000000e+00> : vector<8x256xf32>
    %84 = tpu.matmul %83, %81, %cst_56 {dimension_numbers = #tpu.dot_dimension_numbers<[1], [0], [0], [1], [0, 0, 1, 1], [], []>} : vector<8x16xbf16>, vector<16x256xbf16>, vector<8x256xf32> -> vector<8x256xf32>
    %85 = arith.addf %80, %84 : vector<8x256xf32>
    %c0_57 = arith.constant 0 : index
    %c145 = arith.constant 145 : index
    %86 = vector.load %arg8[%c0_57, %c145] : memref<16x512xbf16, #tpu.memory_space<vmem>>, vector<16x256xbf16>
    %87 = arith.select %38, %86, %39 : vector<16x256xi1>, vector<16x256xbf16>
    %c8_58 = arith.constant 8 : index
    %c0_59 = arith.constant 0 : index
    %c0_60 = arith.constant 0 : index
    %88 = vector.load %arg3[%c8_58, %c0_59, %c0_60] : memref<9x8x16xbf16, #tpu.memory_space<vmem>>, vector<1x8x16xbf16>
    %89 = vector.shape_cast %88 : vector<1x8x16xbf16> to vector<8x16xbf16>
    %cst_61 = arith.constant dense<0.000000e+00> : vector<8x256xf32>
    %90 = tpu.matmul %89, %87, %cst_61 {dimension_numbers = #tpu.dot_dimension_numbers<[1], [0], [0], [1], [0, 0, 1, 1], [], []>} : vector<8x16xbf16>, vector<16x256xbf16>, vector<8x256xf32> -> vector<8x256xf32>
    %91 = arith.addf %85, %90 : vector<8x256xf32>
    %c0_62 = arith.constant 0 : index
    %c0_63 = arith.constant 0 : index
    %92 = vector.load %arg4[%c0_62, %c0_63] : memref<8x1xf32, #tpu.memory_space<vmem>>, vector<8x1xf32>
    %93 = vector.broadcast %92 : vector<8x1xf32> to vector<8x256xf32>
    %94 = arith.addf %91, %93 : vector<8x256xf32>
    %cst_64 = arith.constant 0.000000e+00 : f32
    %95 = vector.broadcast %cst_64 : f32 to vector<8x256xf32>
    %96 = arith.maximumf %94, %95 : vector<8x256xf32>
    %97 = arith.truncf %96 : vector<8x256xf32> to vector<8x256xbf16>
    %c0_65 = arith.constant 0 : index
    %c128_66 = arith.constant 128 : index
    %98 = vector.load %arg9[%c0_65, %c128_66] : memref<8x512xbf16, #tpu.memory_space<vmem>>, vector<8x256xbf16>
    tpu.vector_store %arg9[%c0_65, %c128_66], %97 {strides = array<i32>} : memref<8x512xbf16, #tpu.memory_space<vmem>>, vector<8x256xbf16>,
    %99 = vector.shape_cast %32 : vector<1x256xi1> to vector<1x256xi1>
    %100 = vector.broadcast %99 : vector<1x256xi1> to vector<8x256xi1>
    %101 = vector.shape_cast %34 : vector<1x256xi1> to vector<1x256xi1>
    %102 = vector.broadcast %101 : vector<1x256xi1> to vector<8x256xi1>
    %cst_67 = arith.constant 0.000000e+00 : bf16
    %103 = vector.broadcast %cst_67 : bf16 to vector<8x256xbf16>
    %cst_68 = arith.constant 0.000000e+00 : f32
    %104 = vector.broadcast %cst_68 : f32 to vector<8x256xf32>
    %c0_69 = arith.constant 0 : index
    %c111_70 = arith.constant 111 : index
    %105 = vector.load %arg9[%c0_69, %c111_70] : memref<8x512xbf16, #tpu.memory_space<vmem>>, vector<8x256xbf16>
    %106 = arith.select %100, %105, %103 : vector<8x256xi1>, vector<8x256xbf16>
    %c0_71 = arith.constant 0 : index
    %c0_72 = arith.constant 0 : index
    %c0_73 = arith.constant 0 : index
    %107 = vector.load %arg5[%c0_71, %c0_72, %c0_73] : memref<9x8x8xbf16, #tpu.memory_space<vmem>>, vector<1x8x8xbf16>
    %108 = vector.shape_cast %107 : vector<1x8x8xbf16> to vector<8x8xbf16>
    %cst_74 = arith.constant dense<0.000000e+00> : vector<8x256xf32>
    %109 = tpu.matmul %108, %106, %cst_74 {dimension_numbers = #tpu.dot_dimension_numbers<[1], [0], [0], [1], [0, 0, 1, 1], [], []>} : vector<8x8xbf16>, vector<8x256xbf16>, vector<8x256xf32> -> vector<8x256xf32>
    %110 = arith.addf %104, %109 : vector<8x256xf32>
    %c0_75 = arith.constant 0 : index
    %c112_76 = arith.constant 112 : index
    %111 = vector.load %arg9[%c0_75, %c112_76] : memref<8x512xbf16, #tpu.memory_space<vmem>>, vector<8x256xbf16>
    %c1_77 = arith.constant 1 : index
    %c0_78 = arith.constant 0 : index
    %c0_79 = arith.constant 0 : index
    %112 = vector.load %arg5[%c1_77, %c0_78, %c0_79] : memref<9x8x8xbf16, #tpu.memory_space<vmem>>, vector<1x8x8xbf16>
    %113 = vector.shape_cast %112 : vector<1x8x8xbf16> to vector<8x8xbf16>
    %cst_80 = arith.constant dense<0.000000e+00> : vector<8x256xf32>
    %114 = tpu.matmul %113, %111, %cst_80 {dimension_numbers = #tpu.dot_dimension_numbers<[1], [0], [0], [1], [0, 0, 1, 1], [], []>} : vector<8x8xbf16>, vector<8x256xbf16>, vector<8x256xf32> -> vector<8x256xf32>
    %115 = arith.addf %110, %114 : vector<8x256xf32>
    %c0_81 = arith.constant 0 : index
    %c113_82 = arith.constant 113 : index
    %116 = vector.load %arg9[%c0_81, %c113_82] : memref<8x512xbf16, #tpu.memory_space<vmem>>, vector<8x256xbf16>
    %117 = arith.select %102, %116, %103 : vector<8x256xi1>, vector<8x256xbf16>
    %c2_83 = arith.constant 2 : index
    %c0_84 = arith.constant 0 : index
    %c0_85 = arith.constant 0 : index
    %118 = vector.load %arg5[%c2_83, %c0_84, %c0_85] : memref<9x8x8xbf16, #tpu.memory_space<vmem>>, vector<1x8x8xbf16>
    %119 = vector.shape_cast %118 : vector<1x8x8xbf16> to vector<8x8xbf16>
    %cst_86 = arith.constant dense<0.000000e+00> : vector<8x256xf32>
    %120 = tpu.matmul %119, %117, %cst_86 {dimension_numbers = #tpu.dot_dimension_numbers<[1], [0], [0], [1], [0, 0, 1, 1], [], []>} : vector<8x8xbf16>, vector<8x256xbf16>, vector<8x256xf32> -> vector<8x256xf32>
    %121 = arith.addf %115, %120 : vector<8x256xf32>
    %c0_87 = arith.constant 0 : index
    %c127_88 = arith.constant 127 : index
    %122 = vector.load %arg9[%c0_87, %c127_88] : memref<8x512xbf16, #tpu.memory_space<vmem>>, vector<8x256xbf16>
    %123 = arith.select %100, %122, %103 : vector<8x256xi1>, vector<8x256xbf16>
    %c3_89 = arith.constant 3 : index
    %c0_90 = arith.constant 0 : index
    %c0_91 = arith.constant 0 : index
    %124 = vector.load %arg5[%c3_89, %c0_90, %c0_91] : memref<9x8x8xbf16, #tpu.memory_space<vmem>>, vector<1x8x8xbf16>
    %125 = vector.shape_cast %124 : vector<1x8x8xbf16> to vector<8x8xbf16>
    %cst_92 = arith.constant dense<0.000000e+00> : vector<8x256xf32>
    %126 = tpu.matmul %125, %123, %cst_92 {dimension_numbers = #tpu.dot_dimension_numbers<[1], [0], [0], [1], [0, 0, 1, 1], [], []>} : vector<8x8xbf16>, vector<8x256xbf16>, vector<8x256xf32> -> vector<8x256xf32>
    %127 = arith.addf %121, %126 : vector<8x256xf32>
    %c0_93 = arith.constant 0 : index
    %c128_94 = arith.constant 128 : index
    %128 = vector.load %arg9[%c0_93, %c128_94] : memref<8x512xbf16, #tpu.memory_space<vmem>>, vector<8x256xbf16>
    %c4_95 = arith.constant 4 : index
    %c0_96 = arith.constant 0 : index
    %c0_97 = arith.constant 0 : index
    %129 = vector.load %arg5[%c4_95, %c0_96, %c0_97] : memref<9x8x8xbf16, #tpu.memory_space<vmem>>, vector<1x8x8xbf16>
    %130 = vector.shape_cast %129 : vector<1x8x8xbf16> to vector<8x8xbf16>
    %cst_98 = arith.constant dense<0.000000e+00> : vector<8x256xf32>
    %131 = tpu.matmul %130, %128, %cst_98 {dimension_numbers = #tpu.dot_dimension_numbers<[1], [0], [0], [1], [0, 0, 1, 1], [], []>} : vector<8x8xbf16>, vector<8x256xbf16>, vector<8x256xf32> -> vector<8x256xf32>
    %132 = arith.addf %127, %131 : vector<8x256xf32>
    %c0_99 = arith.constant 0 : index
    %c129_100 = arith.constant 129 : index
    %133 = vector.load %arg9[%c0_99, %c129_100] : memref<8x512xbf16, #tpu.memory_space<vmem>>, vector<8x256xbf16>
    %134 = arith.select %102, %133, %103 : vector<8x256xi1>, vector<8x256xbf16>
    %c5_101 = arith.constant 5 : index
    %c0_102 = arith.constant 0 : index
    %c0_103 = arith.constant 0 : index
    %135 = vector.load %arg5[%c5_101, %c0_102, %c0_103] : memref<9x8x8xbf16, #tpu.memory_space<vmem>>, vector<1x8x8xbf16>
    %136 = vector.shape_cast %135 : vector<1x8x8xbf16> to vector<8x8xbf16>
    %cst_104 = arith.constant dense<0.000000e+00> : vector<8x256xf32>
    %137 = tpu.matmul %136, %134, %cst_104 {dimension_numbers = #tpu.dot_dimension_numbers<[1], [0], [0], [1], [0, 0, 1, 1], [], []>} : vector<8x8xbf16>, vector<8x256xbf16>, vector<8x256xf32> -> vector<8x256xf32>
    %138 = arith.addf %132, %137 : vector<8x256xf32>
    %c0_105 = arith.constant 0 : index
    %c143_106 = arith.constant 143 : index
    %139 = vector.load %arg9[%c0_105, %c143_106] : memref<8x512xbf16, #tpu.memory_space<vmem>>, vector<8x256xbf16>
    %140 = arith.select %100, %139, %103 : vector<8x256xi1>, vector<8x256xbf16>
    %c6_107 = arith.constant 6 : index
    %c0_108 = arith.constant 0 : index
    %c0_109 = arith.constant 0 : index
    %141 = vector.load %arg5[%c6_107, %c0_108, %c0_109] : memref<9x8x8xbf16, #tpu.memory_space<vmem>>, vector<1x8x8xbf16>
    %142 = vector.shape_cast %141 : vector<1x8x8xbf16> to vector<8x8xbf16>
    %cst_110 = arith.constant dense<0.000000e+00> : vector<8x256xf32>
    %143 = tpu.matmul %142, %140, %cst_110 {dimension_numbers = #tpu.dot_dimension_numbers<[1], [0], [0], [1], [0, 0, 1, 1], [], []>} : vector<8x8xbf16>, vector<8x256xbf16>, vector<8x256xf32> -> vector<8x256xf32>
    %144 = arith.addf %138, %143 : vector<8x256xf32>
    %c0_111 = arith.constant 0 : index
    %c144_112 = arith.constant 144 : index
    %145 = vector.load %arg9[%c0_111, %c144_112] : memref<8x512xbf16, #tpu.memory_space<vmem>>, vector<8x256xbf16>
    %c7_113 = arith.constant 7 : index
    %c0_114 = arith.constant 0 : index
    %c0_115 = arith.constant 0 : index
    %146 = vector.load %arg5[%c7_113, %c0_114, %c0_115] : memref<9x8x8xbf16, #tpu.memory_space<vmem>>, vector<1x8x8xbf16>
    %147 = vector.shape_cast %146 : vector<1x8x8xbf16> to vector<8x8xbf16>
    %cst_116 = arith.constant dense<0.000000e+00> : vector<8x256xf32>
    %148 = tpu.matmul %147, %145, %cst_116 {dimension_numbers = #tpu.dot_dimension_numbers<[1], [0], [0], [1], [0, 0, 1, 1], [], []>} : vector<8x8xbf16>, vector<8x256xbf16>, vector<8x256xf32> -> vector<8x256xf32>
    %149 = arith.addf %144, %148 : vector<8x256xf32>
    %c0_117 = arith.constant 0 : index
    %c145_118 = arith.constant 145 : index
    %150 = vector.load %arg9[%c0_117, %c145_118] : memref<8x512xbf16, #tpu.memory_space<vmem>>, vector<8x256xbf16>
    %151 = arith.select %102, %150, %103 : vector<8x256xi1>, vector<8x256xbf16>
    %c8_119 = arith.constant 8 : index
    %c0_120 = arith.constant 0 : index
    %c0_121 = arith.constant 0 : index
    %152 = vector.load %arg5[%c8_119, %c0_120, %c0_121] : memref<9x8x8xbf16, #tpu.memory_space<vmem>>, vector<1x8x8xbf16>
    %153 = vector.shape_cast %152 : vector<1x8x8xbf16> to vector<8x8xbf16>
    %cst_122 = arith.constant dense<0.000000e+00> : vector<8x256xf32>
    %154 = tpu.matmul %153, %151, %cst_122 {dimension_numbers = #tpu.dot_dimension_numbers<[1], [0], [0], [1], [0, 0, 1, 1], [], []>} : vector<8x8xbf16>, vector<8x256xbf16>, vector<8x256xf32> -> vector<8x256xf32>
    %155 = arith.addf %149, %154 : vector<8x256xf32>
    %c0_123 = arith.constant 0 : index
    %c0_124 = arith.constant 0 : index
    %156 = vector.load %arg6[%c0_123, %c0_124] : memref<8x1xf32, #tpu.memory_space<vmem>>, vector<8x1xf32>
    %157 = vector.broadcast %156 : vector<8x1xf32> to vector<8x256xf32>
    %158 = arith.addf %155, %157 : vector<8x256xf32>
    %cst_125 = arith.constant 0.000000e+00 : f32
    %159 = vector.broadcast %cst_125 : f32 to vector<8x256xf32>
    %160 = arith.maximumf %158, %159 : vector<8x256xf32>
    %c0_126 = arith.constant 0 : index
    %c0_127 = arith.constant 0 : index
    %c0_128 = arith.constant 0 : index
    %161 = vector.load %arg7[%c0_126, %c0_127, %c0_128] : memref<1x8x256xf32, #tpu.memory_space<vmem>>, vector<1x8x256xf32>
    %162 = vector.shape_cast %161 : vector<1x8x256xf32> to vector<8x256xf32>
    %163 = vector.shape_cast %160 : vector<8x256xf32> to vector<1x8x256xf32>
    tpu.vector_store %arg7[%c0_126, %c0_127, %c0_128], %163 {strides = array<i32>} : memref<1x8x256xf32, #tpu.memory_space<vmem>>, vector<1x8x256xf32>,
    return
  }
  func.func @transform_0(%arg0: i32) -> (i32, i32, i32) {
    %c0_i32 = arith.constant 0 : i32
    %c0_i32_0 = arith.constant 0 : i32
    %c0_i32_1 = arith.constant 0 : i32
    return %arg0, %c0_i32, %c0_i32_0 : i32, i32, i32
  }
  func.func @transform_1(%arg0: i32) -> (i32, i32, i32) {
    %c0_i32 = arith.constant 0 : i32
    %c0_i32_0 = arith.constant 0 : i32
    %c0_i32_1 = arith.constant 0 : i32
    return %arg0, %c0_i32, %c0_i32_0 : i32, i32, i32
  }
  func.func @transform_2(%arg0: i32) -> (i32, i32, i32) {
    %c0_i32 = arith.constant 0 : i32
    %c0_i32_0 = arith.constant 0 : i32
    %c0_i32_1 = arith.constant 0 : i32
    %c0_i32_2 = arith.constant 0 : i32
    return %c0_i32, %c0_i32_0, %c0_i32_1 : i32, i32, i32
  }
  func.func @transform_3(%arg0: i32) -> (i32, i32) {
    %c0_i32 = arith.constant 0 : i32
    %c0_i32_0 = arith.constant 0 : i32
    %c0_i32_1 = arith.constant 0 : i32
    return %c0_i32, %c0_i32_0 : i32, i32
  }
  func.func @transform_4(%arg0: i32) -> (i32, i32, i32) {
    %c0_i32 = arith.constant 0 : i32
    %c0_i32_0 = arith.constant 0 : i32
    %c0_i32_1 = arith.constant 0 : i32
    %c0_i32_2 = arith.constant 0 : i32
    return %c0_i32, %c0_i32_0, %c0_i32_1 : i32, i32, i32
  }
  func.func @transform_5(%arg0: i32) -> (i32, i32) {
    %c0_i32 = arith.constant 0 : i32
    %c0_i32_0 = arith.constant 0 : i32
    %c0_i32_1 = arith.constant 0 : i32
    return %c0_i32, %c0_i32_0 : i32, i32
  }
  func.func @transform_6(%arg0: i32) -> (i32, i32, i32) {
    %c0_i32 = arith.constant 0 : i32
    %c0_i32_0 = arith.constant 0 : i32
    %c0_i32_1 = arith.constant 0 : i32
    return %arg0, %c0_i32, %c0_i32_0 : i32, i32, i32
  }
}

</mosaic_0001>

<llo_original>
// kernel: tpu_custom_call.1
$region0: #{tpu_custom_call.1}
  #allocation0 [shape = 'u32[]', space=smem, size = 0x4, offset = 0x4, fixed_abs, tag = 'smem constant byte address 0x4 - core index']
  #allocation1 [shape = 'u32[72,128]{1,0:T(1,128)}', space=vmem, size = 0x9000, scoped, tag = 'internal scratch']
  #allocation2 [shape = 'bf16[16,512]{1,0:T(8,128)(2,1)}', space=vmem, size = 0x4000, scoped, tag = 'scratch operand']
  #allocation3 [shape = 'bf16[8,512]{1,0:T(8,128)(2,1)}', space=vmem, size = 0x2000, scoped, tag = 'scratch operand']
  %s0 = inlined_call_operand.vmem [shape: bf16[2,8,256], index: 0, kind: input, shape index: {}]
  %s1 = inlined_call_operand.vmem [shape: bf16[2,8,256], index: 1, kind: input, shape index: {}]
  %s2 = inlined_call_operand.vmem [shape: bf16[9,8,16], index: 2, kind: input, shape index: {}]
  %s3 = inlined_call_operand.vmem [shape: f32[8,1], index: 3, kind: input, shape index: {}]
  %s4 = inlined_call_operand.vmem [shape: bf16[9,8,8], index: 4, kind: input, shape index: {}]
  %s5 = inlined_call_operand.vmem [shape: f32[8,1], index: 5, kind: input, shape index: {}]
  %s6 = inlined_call_operand.hbm [shape: f32[2,8,256], index: 6, kind: output, shape index: {}]
  %s7 = sld [smem:[#allocation0]]
  $region57: #{tpu_custom_call.1} parent=0
    _
  %s9 = ssub.s32 1, %s7
  %s10 = scalar_select 0, %s9, %s7
  $region1: #{tpu_custom_call.1} parent=0
    #allocation4 [shape = 'u8[16384]{0}', space=vmem, size = 0x4000, scoped, tag = 'output window, operand 0']
    #allocation5 [shape = 's32[2]{0}', space=sflag, size = 0x8, scoped, tag = 'scoped memory for tpu_custom_call.1']
    %11 = vsyncpa [#allocation5], 0
    %s12 = scalar_lea.sflag [#allocation5], 1
    %13 = vsyncpa %s12, 0
    loop: start=0, step=1, limit=4
    $region2: #{tpu_custom_call.1} parent=1 // loop_pre_header
      _
    $region3: #{tpu_custom_call.1} parent=1 // loop_header
      %s15 = sphi 0, %s19
      %p16 = scmp.ge.s32.totalorder %s15, 4
      %s25 = sphi 0, %s27
      %s28 = sphi 0, %s25
      %s29 = sphi 0, %s28
      %s45 = sphi 0, %s29
      %s51 = sphi 0, %s53
      %s54 = sphi 0, %s51
      %s55 = sphi 0, %s54
      %s71 = sphi 0, %s55
      %s75 = sphi 0, %s75
      %s77 = sphi 0, %s75
      %s78 = sphi 0, %s77
      %s92 = sphi 0, %s78
      %s96 = sphi 0, %s96
      %s98 = sphi 0, %s96
      %s99 = sphi 0, %s98
      %s113 = sphi 0, %s99
      %s117 = sphi 0, %s117
      %s119 = sphi 0, %s117
      %s120 = sphi 0, %s119
      %s134 = sphi 0, %s120
      %s138 = sphi 0, %s138
      %s140 = sphi 0, %s138
      %s141 = sphi 0, %s140
      %s155 = sphi 0, %s141
      %s161 = sphi 0, %s163
      %s164 = sphi 0, %s161
      %s165 = sphi 0, %s164
      %s181 = sphi 0, %s165
    $region4: #{tpu_custom_call.1} parent=1 // loop_header_branch
      %18 = sbr.rel (%p16) target = $region8
    $region5: #{tpu_custom_call.1} parent=1 // loop_body
      %s20 = ssub.s32 %s15, 1
      %s21 = ssub.s32 %s15, 2
      %s22 = sadd.s32 %s15, 1
      %s23 = ssub.s32 %s15, %s22
      %p24 = scmp.eq.s32.totalorder %s23, 0
      %s26 = sadd.s32 %s25, 1
      %s27 = scalar_select %p24, %s25, %s26
      %p30 = pneg %p24
      %p31 = scmp.eq.s32.totalorder %s15, 1
      %p32 = por %p30, %p31
      %p33 = scmp.ne.s32.totalorder %s25, %s28
      %p34 = scmp.eq.s32.totalorder %s15, 0
      %p35 = por %p33, %p34
      %p36 = scmp.ne.s32.totalorder %s25, %s28
      %p37 = scmp.eq.s32.totalorder %s20, 1
      %p38 = por %p36, %p37
      %p39 = scmp.ne.s32.totalorder %s28, %s29
      %p40 = scmp.eq.s32.totalorder %s20, 0
      %p41 = por %p39, %p40
      %p42 = scmp.ne.s32.totalorder %s28, %s29
      %p43 = scmp.eq.s32.totalorder %s21, 1
      %p44 = por %p42, %p43
      %p46 = scmp.ne.s32.totalorder %s29, %s45
      %p47 = scmp.eq.s32.totalorder %s21, 0
      %p48 = por %p46, %p47
      %s49 = ssub.s32 %s15, %s22
      %p50 = scmp.eq.s32.totalorder %s49, 0
      %s52 = sadd.s32 %s51, 1
      %s53 = scalar_select %p50, %s51, %s52
      %p56 = pneg %p50
      %p57 = scmp.eq.s32.totalorder %s15, 1
      %p58 = por %p56, %p57
      %p59 = scmp.ne.s32.totalorder %s51, %s54
      %p60 = scmp.eq.s32.totalorder %s15, 0
      %p61 = por %p59, %p60
      %p62 = scmp.ne.s32.totalorder %s51, %s54
      %p63 = scmp.eq.s32.totalorder %s20, 1
      %p64 = por %p62, %p63
      %p65 = scmp.ne.s32.totalorder %s54, %s55
      %p66 = scmp.eq.s32.totalorder %s20, 0
      %p67 = por %p65, %p66
      %p68 = scmp.ne.s32.totalorder %s54, %s55
      %p69 = scmp.eq.s32.totalorder %s21, 1
      %p70 = por %p68, %p69
      %p72 = scmp.ne.s32.totalorder %s55, %s71
      %p73 = scmp.eq.s32.totalorder %s21, 0
      %p74 = por %p72, %p73
      %s76 = sadd.s32 %s75, 1
      %p79 = scmp.eq.s32.totalorder %s15, 1
      %p80 = scmp.ne.s32.totalorder %s75, %s77
      %p81 = scmp.eq.s32.totalorder %s15, 0
      %p82 = por %p80, %p81
      %p83 = scmp.ne.s32.totalorder %s75, %s77
      %p84 = scmp.eq.s32.totalorder %s20, 1
      %p85 = por %p83, %p84
      %p86 = scmp.ne.s32.totalorder %s77, %s78
      %p87 = scmp.eq.s32.totalorder %s20, 0
      %p88 = por %p86, %p87
      %p89 = scmp.ne.s32.totalorder %s77, %s78
      %p90 = scmp.eq.s32.totalorder %s21, 1
      %p91 = por %p89, %p90
      %p93 = scmp.ne.s32.totalorder %s78, %s92
      %p94 = scmp.eq.s32.totalorder %s21, 0
      %p95 = por %p93, %p94
      %s97 = sadd.s32 %s96, 1
      %p100 = scmp.eq.s32.totalorder %s15, 1
      %p101 = scmp.ne.s32.totalorder %s96, %s98
      %p102 = scmp.eq.s32.totalorder %s15, 0
      %p103 = por %p101, %p102
      %p104 = scmp.ne.s32.totalorder %s96, %s98
      %p105 = scmp.eq.s32.totalorder %s20, 1
      %p106 = por %p104, %p105
      %p107 = scmp.ne.s32.totalorder %s98, %s99
      %p108 = scmp.eq.s32.totalorder %s20, 0
      %p109 = por %p107, %p108
      %p110 = scmp.ne.s32.totalorder %s98, %s99
      %p111 = scmp.eq.s32.totalorder %s21, 1
      %p112 = por %p110, %p111
      %p114 = scmp.ne.s32.totalorder %s99, %s113
      %p115 = scmp.eq.s32.totalorder %s21, 0
      %p116 = por %p114, %p115
      %s118 = sadd.s32 %s117, 1
      %p121 = scmp.eq.s32.totalorder %s15, 1
      %p122 = scmp.ne.s32.totalorder %s117, %s119
      %p123 = scmp.eq.s32.totalorder %s15, 0
      %p124 = por %p122, %p123
      %p125 = scmp.ne.s32.totalorder %s117, %s119
      %p126 = scmp.eq.s32.totalorder %s20, 1
      %p127 = por %p125, %p126
      %p128 = scmp.ne.s32.totalorder %s119, %s120
      %p129 = scmp.eq.s32.totalorder %s20, 0
      %p130 = por %p128, %p129
      %p131 = scmp.ne.s32.totalorder %s119, %s120
      %p132 = scmp.eq.s32.totalorder %s21, 1
      %p133 = por %p131, %p132
      %p135 = scmp.ne.s32.totalorder %s120, %s134
      %p136 = scmp.eq.s32.totalorder %s21, 0
      %p137 = por %p135, %p136
      %s139 = sadd.s32 %s138, 1
      %p142 = scmp.eq.s32.totalorder %s15, 1
      %p143 = scmp.ne.s32.totalorder %s138, %s140
      %p144 = scmp.eq.s32.totalorder %s15, 0
      %p145 = por %p143, %p144
      %p146 = scmp.ne.s32.totalorder %s138, %s140
      %p147 = scmp.eq.s32.totalorder %s20, 1
      %p148 = por %p146, %p147
      %p149 = scmp.ne.s32.totalorder %s140, %s141
      %p150 = scmp.eq.s32.totalorder %s20, 0
      %p151 = por %p149, %p150
      %p152 = scmp.ne.s32.totalorder %s140, %s141
      %p153 = scmp.eq.s32.totalorder %s21, 1
      %p154 = por %p152, %p153
      %p156 = scmp.ne.s32.totalorder %s141, %s155
      %p157 = scmp.eq.s32.totalorder %s21, 0
      %p158 = por %p156, %p157
      %s159 = ssub.s32 %s15, %s22
      %p160 = scmp.eq.s32.totalorder %s159, 0
      %s162 = sadd.s32 %s161, 1
      %s163 = scalar_select %p160, %s161, %s162
      %p166 = pneg %p160
      %p167 = scmp.eq.s32.totalorder %s15, 1
      %p168 = por %p166, %p167
      %p169 = scmp.ne.s32.totalorder %s161, %s164
      %p170 = scmp.eq.s32.totalorder %s15, 0
      %p171 = por %p169, %p170
      %p172 = scmp.ne.s32.totalorder %s161, %s164
      %p173 = scmp.eq.s32.totalorder %s20, 1
      %p174 = por %p172, %p173
      %p175 = scmp.ne.s32.totalorder %s164, %s165
      %p176 = scmp.eq.s32.totalorder %s20, 0
      %p177 = por %p175, %p176
      %p178 = scmp.ne.s32.totalorder %s164, %s165
      %p179 = scmp.eq.s32.totalorder %s21, 1
      %p180 = por %p178, %p179
      %p182 = scmp.ne.s32.totalorder %s165, %s181
      %p183 = scmp.eq.s32.totalorder %s21, 0
      %p184 = por %p182, %p183
      %p185 = scmp.le.s32.totalorder 1, %s15
      %p186 = scmp.lt.s32.totalorder %s15, 3
      %p187 = pnand %p185, %p186
      %p188 = pneg %p187
      // Predicated region
      $region9: #{tpu_custom_call.1} parent=5 // pred_check
        _
      $region10: #{tpu_custom_call.1} parent=5 // pred_check_branch
        %190 = sbr.rel (%p187) target = $region12
      $region11: #{tpu_custom_call.1} parent=5 // pred_region
        %s191 = ssub.s32 %s15, 1
        // Predicated region
        $region13: #{tpu_custom_call.1} parent=11 // pred_check
          %p192 = pneg %p88
        $region14: #{tpu_custom_call.1} parent=11 // pred_check_branch
          %194 = sbr.rel (%p192) target = $region16
        $region15: #{tpu_custom_call.1} parent=11 // pred_region
          _
        $region16: #{tpu_custom_call.1} parent=11 // pred_fallthru
          _
        // Predicated region
        $region17: #{tpu_custom_call.1} parent=11 // pred_check
          %p195 = pneg %p109
        $region18: #{tpu_custom_call.1} parent=11 // pred_check_branch
          %197 = sbr.rel (%p195) target = $region20
        $region19: #{tpu_custom_call.1} parent=11 // pred_region
          _
        $region20: #{tpu_custom_call.1} parent=11 // pred_fallthru
          _
        // Predicated region
        $region21: #{tpu_custom_call.1} parent=11 // pred_check
          %p198 = pneg %p130
        $region22: #{tpu_custom_call.1} parent=11 // pred_check_branch
          %200 = sbr.rel (%p198) target = $region24
        $region23: #{tpu_custom_call.1} parent=11 // pred_region
          _
        $region24: #{tpu_custom_call.1} parent=11 // pred_fallthru
          _
        // Predicated region
        $region25: #{tpu_custom_call.1} parent=11 // pred_check
          %p201 = pneg %p151
        $region26: #{tpu_custom_call.1} parent=11 // pred_check_branch
          %203 = sbr.rel (%p201) target = $region28
        $region27: #{tpu_custom_call.1} parent=11 // pred_region
          _
        $region28: #{tpu_custom_call.1} parent=11 // pred_fallthru
          _
      $region12: #{tpu_custom_call.1} parent=5 // pred_fallthru
        _
      %p204 = scmp.lt.s32.totalorder %s15, 2
      // Predicated region
      $region29: #{tpu_custom_call.1} parent=5 // pred_check
        %p205 = pneg %p204
      $region30: #{tpu_custom_call.1} parent=5 // pred_check_branch
        %207 = sbr.rel (%p205) target = $region32
      $region31: #{tpu_custom_call.1} parent=5 // pred_region
        // Predicated region
        $region33: #{tpu_custom_call.1} parent=31 // pred_check
          %p208 = pneg %p35
        $region34: #{tpu_custom_call.1} parent=31 // pred_check_branch
          %210 = sbr.rel (%p208) target = $region36
        $region35: #{tpu_custom_call.1} parent=31 // pred_region
          %p211 = scmp.lt.s32.totalorder %s15, 1
          %s212 = scalar_select %p211, %s15, 1
          %s213 = smul.addr %s212, 2
          %s214 = smul.addr %s213, 4
          %s215 = scalar_lea.vmem %s0, %s214
        $region36: #{tpu_custom_call.1} parent=31 // pred_fallthru
          _
        // Predicated region
        $region37: #{tpu_custom_call.1} parent=31 // pred_check
          %p216 = pneg %p61
        $region38: #{tpu_custom_call.1} parent=31 // pred_check_branch
          %218 = sbr.rel (%p216) target = $region40
        $region39: #{tpu_custom_call.1} parent=31 // pred_region
          %p219 = scmp.lt.s32.totalorder %s15, 1
          %s220 = scalar_select %p219, %s15, 1
          %s221 = smul.addr %s220, 2
          %s222 = smul.addr %s221, 4
          %s223 = scalar_lea.vmem %s1, %s222
        $region40: #{tpu_custom_call.1} parent=31 // pred_fallthru
          _
      $region32: #{tpu_custom_call.1} parent=5 // pred_fallthru
        _
      %p224 = scmp.le.s32.totalorder 1, %s15
      %p225 = scmp.lt.s32.totalorder %s15, 3
      %p226 = pnand %p224, %p225
      %p227 = pneg %p226
      // Predicated region
      $region41: #{tpu_custom_call.1} parent=5 // pred_check
        _
      $region42: #{tpu_custom_call.1} parent=5 // pred_check_branch
        %229 = sbr.rel (%p226) target = $region44
      $region43: #{tpu_custom_call.1} parent=5 // pred_region
        %s230 = ssub.s32 %s15, 1
        %p231 = scmp.lt.s32.totalorder %s20, 1
        %s232 = scalar_select %p231, %s20, 1
        %s233 = smul.addr %s232, 2
        %s234 = smul.addr %s233, 4
        %s235 = scalar_lea.vmem %s0, %s234
        %p236 = pneg %p41
        %p237 = pneg %p38
        %p238 = scmp.lt.s32.totalorder %s20, 1
        %s239 = scalar_select %p238, %s20, 1
        %s240 = smul.addr %s239, 2
        %s241 = smul.addr %s240, 4
        %s242 = scalar_lea.vmem %s1, %s241
        %p243 = pneg %p67
        %p244 = pneg %p64
        %p245 = pneg %p88
        %p246 = pneg %p85
        %p247 = pneg %p109
        %p248 = pneg %p106
        %p249 = pneg %p130
        %p250 = pneg %p127
        %p251 = pneg %p151
        %p252 = pneg %p148
        %p253 = pneg %p177
        %p254 = pneg %p174
        %s255 = sand.u32 %s164, 1
        %s256 = scalar_lea.sflag [#allocation5], %s255
        %s257 = sand.u32 %s164, 1
        %s258 = smul.addr %s257, 16
        %s259 = scalar_lea.vmem [#allocation4], %s258
        %p260 = scmp.lt.s32.totalorder %s20, 1
        %s261 = scalar_select %p260, %s20, 1
        %s262 = smul.addr %s261, 2
        %s263 = smul.addr %s262, 4
        %s264 = scalar_lea.vmem %s0, %s263
        %p265 = scmp.lt.s32.totalorder %s20, 1
        %s266 = scalar_select %p265, %s20, 1
        %s267 = smul.addr %s266, 2
        %s268 = smul.addr %s267, 4
        %s269 = scalar_lea.vmem %s1, %s268
        %vm273 = vcmask 1044344
        %274 = vst.msk [vmem:[#allocation2] sm:$0xf] %vm273, 0
        %275 = vst.msk [vmem:[#allocation2 + $0x10] sm:$0xf] %vm273, 0
        %vm276 = vcmask 134144
        %277 = vst.msk [vmem:[#allocation2 + $0xc] sm:$0xf] %vm276, 0
        %278 = vst.msk [vmem:[#allocation2 + $0x1c] sm:$0xf] %vm276, 0
        %279 = vst.msk [vmem:[#allocation3] sm:$0xf] %vm273, 0
        %280 = vst.msk [vmem:[#allocation3 + $0xc] sm:$0xf] %vm276, 0
        %v281 = vld [vmem:[%s264] sm:$0xff]
        %282 = vst [vmem:[#allocation2 + $0x4] sm:$0xff] %v281
        %v283 = vld [vmem:[%s269] sm:$0xff]
        %284 = vst [vmem:[#allocation2 + $0x14] sm:$0xff] %v283
        %v285 = vlaneseq
        %v286 = vand.u32 %v285, 127
        %v287 = vadd.s32 %v286, 128
        %vm288 = vcmp.lt.s32.totalorder %v286, 0
        %v289 = vsub.s32 0, %v286
        %v290 = vsel %vm288, %v289, %v286
        %v291 = vshrl.u32 %v290, 4
        %v292 = vand.u32 %v290, 15
        %v293 = vsub.s32 0, %v292
        %v294 = vsel %vm288, %v293, %v292
        %vm295 = vcmp.lt.s32.totalorder %v287, 0
        %v296 = vsub.s32 0, %v287
        %v297 = vsel %vm295, %v296, %v287
        %v298 = vshrl.u32 %v297, 4
        %v299 = vand.u32 %v297, 15
        %v300 = vsub.s32 0, %v299
        %v301 = vsel %vm295, %v300, %v299
        %vm302 = vcmp.ne.s32.totalorder %v294, 0
        %vm303 = vcmp.ne.s32.totalorder %v301, 0
        %vm304 = vcmp.lt.s32.totalorder %v294, 0
        %vm305 = vcmp.lt.s32.totalorder %v301, 0
        %vm306 = vmand %vm304, %vm302
        %vm307 = vmand %vm305, %vm303
        %v308 = vadd.s32 %v294, 16
        %v309 = vadd.s32 %v301, 16
        %v310 = vsel %vm306, %v308, %v294
        %v311 = vsel %vm307, %v309, %v301
        %vm312 = vcmp.ne.s32.totalorder %v310, 0
        %vm313 = vcmp.ne.s32.totalorder %v311, 0
        %vm314 = vcmp.ne.s32.totalorder %v310, 15
        %vm315 = vcmp.ne.s32.totalorder %v311, 15
        %v316 = vsel %vm312, 1, 0
        %v317 = vsel %vm313, 1, 0
        %vm318 = vcmp.eq.s32.totalorder %v316, 1
        %vm319 = vcmp.eq.s32.totalorder %v317, 1
        %v320 = vsel %vm314, 1, 0
        %v321 = vsel %vm315, 1, 0
        %vm322 = vcmp.eq.s32.totalorder %v320, 1
        %vm323 = vcmp.eq.s32.totalorder %v321, 1
        %v324 = vld [vmem:[#allocation2] sm:$0xff]
        %v325 = vld [vmem:[#allocation2 + $0x8] sm:$0xf]
        %v326 = vld [vmem:[#allocation2 + $0x10] sm:$0xff]
        %v327 = vld [vmem:[#allocation2 + $0x18] sm:$0xf]
        %vm328 = vmpackc.low %vm319, %vm318
        %v329 = vsel %vm328, 65537, 0
        %330 = vrot.lane.b32.xlu0 %v329, 111
        %v331 = vpop.permute.xlu0 %330
        %v332 = vrot.slane %v331, 4
        %vm333 = vcmask 908288
        %v334 = vsel %vm333, %v332, %v331
        %v335 = vunpack.c.l.b16 %v334
        %v336 = vunpack.c.h.b16 %v334
        %v337 = vunpack.c.l.b16 0
        %v338 = vunpack.c.h.b16 0
        %vm339 = vcmp.ne.s32.totalorder %v335, %v337
        %vm340 = vcmp.ne.s32.totalorder %v336, %v338
        %vm341 = vmpackc.low %vm340, %vm339
        %v342 = vunpack.c.l.b16 %v332
        %v343 = vunpack.c.h.b16 %v332
        %v344 = vunpack.c.l.b16 0
        %v345 = vunpack.c.h.b16 0
        %vm346 = vcmp.ne.s32.totalorder %v342, %v344
        %vm347 = vcmp.ne.s32.totalorder %v343, %v345
        %vm348 = vmpackc.low %vm347, %vm346
        %v349 = vsel %vm341, %v324, 0
        %v350 = vsel %vm348, %v325, 0
        %v351 = vsel %vm341, %v326, 0
        %v352 = vsel %vm348, %v327, 0
        %v353 = vld [vmem:[%s2] sm:$0xf]
        %s354 = scalar_lea.vmem %s2, 4
        %v355 = vld [vmem:[%s354] sm:$0xf]
        %v360 = vunpack.c.l.b16 %v324
        %v361 = vunpack.c.h.b16 %v324
        %v362 = vunpack.c.l.b16 %v325
        %v363 = vunpack.c.l.b16 %v326
        %v364 = vunpack.c.h.b16 %v326
        %v365 = vunpack.c.l.b16 %v327
        %v366 = vpack.c.b16 %v363, %v360
        %v367 = vpack.c.b16 %v364, %v361
        %v368 = vpack.c.b16 %v365, %v362
        %369 = vrot.lane.b32.xlu0 %v366, 16
        %v370 = vpop.permute.xlu0 %369
        %371 = vrot.lane.b32.xlu0 %v367, 16
        %v372 = vpop.permute.xlu0 %371
        %373 = vrot.lane.b32.xlu0 %v368, 16
        %v374 = vpop.permute.xlu0 %373
        %vm375 = vcmask 130048
        %v376 = vsel %vm375, %v370, %v372
        %v377 = vsel %vm375, %v372, %v374
        %vm380 = vcmask 130048
        %v382 = vsel %vm380, %v355, 0
        %384 = vmatpush.bf16.msra.mxu0 0
        %385 = vmatpush.bf16.msra.mxu0 0
        %386 = vmatpush.bf16.msra.mxu0 0
        %387 = vmatpush.bf16.msra.mxu0 0
        %388 = vmatpush.bf16.msra.mxu0 0
        %389 = vmatpush.bf16.msra.mxu0 0
        %390 = vmatpush.bf16.msra.mxu0 0
        %391 = vmatpush.bf16.msra.mxu0 %v376
        %392 = vmatmul.bf16.gmra.mxu0 %v382
        %v393 = vpop.f32.mrf.mxu0
        %v394 = vadd.f32 0.0, %v393
        %v395 = vpop.f32.mrf.mxu0
        %396 = vdwg.mxu0
        %397 = vmatpush.bf16.msra.mxu0 0
        %398 = vmatpush.bf16.msra.mxu0 0
        %399 = vmatpush.bf16.msra.mxu0 0
        %400 = vmatpush.bf16.msra.mxu0 0
        %401 = vmatpush.bf16.msra.mxu0 0
        %402 = vmatpush.bf16.msra.mxu0 0
        %403 = vmatpush.bf16.msra.mxu0 0
        %404 = vmatpush.bf16.msra.mxu0 %v377
        %405 = vmatmul.bf16.gmra.mxu0 %v382
        %v406 = vpop.f32.mrf.mxu0
        %v407 = vadd.f32 0.0, %v406
        %v408 = vpop.f32.mrf.mxu0
        %409 = vdwg.mxu0
        %v414 = vunpack.c.l.b16 %v349
        %v415 = vunpack.c.h.b16 %v349
        %v416 = vunpack.c.l.b16 %v350
        %v417 = vunpack.c.l.b16 %v351
        %v418 = vunpack.c.h.b16 %v351
        %v419 = vunpack.c.l.b16 %v352
        %v420 = vpack.c.b16 %v417, %v414
        %v421 = vpack.c.b16 %v418, %v415
        %v422 = vpack.c.b16 %v419, %v416
        %423 = vrot.lane.b32.xlu0 %v420, 17
        %v424 = vpop.permute.xlu0 %423
        %425 = vrot.lane.b32.xlu0 %v421, 17
        %v426 = vpop.permute.xlu0 %425
        %427 = vrot.lane.b32.xlu0 %v422, 17
        %v428 = vpop.permute.xlu0 %427
        %vm429 = vcmask 138240
        %v430 = vsel %vm429, %v424, %v426
        %v431 = vsel %vm429, %v426, %v428
        %v435 = vsel %vm380, %v353, 0
        %437 = vmatpush.bf16.msra.mxu0 0
        %438 = vmatpush.bf16.msra.mxu0 0
        %439 = vmatpush.bf16.msra.mxu0 0
        %440 = vmatpush.bf16.msra.mxu0 0
        %441 = vmatpush.bf16.msra.mxu0 0
        %442 = vmatpush.bf16.msra.mxu0 0
        %443 = vmatpush.bf16.msra.mxu0 0
        %444 = vmatpush.bf16.msra.mxu0 %v430
        %445 = vmatmul.bf16.gmra.mxu0 %v435
        %v446 = vpop.f32.mrf.mxu0
        %v447 = vadd.f32 %v394, %v446
        %v448 = vpop.f32.mrf.mxu0
        %449 = vdwg.mxu0
        %450 = vmatpush.bf16.msra.mxu0 0
        %451 = vmatpush.bf16.msra.mxu0 0
        %452 = vmatpush.bf16.msra.mxu0 0
        %453 = vmatpush.bf16.msra.mxu0 0
        %454 = vmatpush.bf16.msra.mxu0 0
        %455 = vmatpush.bf16.msra.mxu0 0
        %456 = vmatpush.bf16.msra.mxu0 0
        %457 = vmatpush.bf16.msra.mxu0 %v431
        %458 = vmatmul.bf16.gmra.mxu0 %v435
        %v459 = vpop.f32.mrf.mxu0
        %v460 = vadd.f32 %v407, %v459
        %v461 = vpop.f32.mrf.mxu0
        %462 = vdwg.mxu0
        %vm463 = vmpackc.low %vm323, %vm322
        %v464 = vsel %vm463, 65537, 0
        %465 = vrot.lane.b32.xlu0 %v464, 113
        %v466 = vpop.permute.xlu0 %465
        %v467 = vrot.slane %v466, 4
        %vm468 = vcmask 924672
        %v469 = vsel %vm468, %v467, %v466
        %v470 = vunpack.c.l.b16 %v469
        %v471 = vunpack.c.h.b16 %v469
        %v472 = vunpack.c.l.b16 0
        %v473 = vunpack.c.h.b16 0
        %vm474 = vcmp.ne.s32.totalorder %v470, %v472
        %vm475 = vcmp.ne.s32.totalorder %v471, %v473
        %vm476 = vmpackc.low %vm475, %vm474
        %v477 = vunpack.c.l.b16 %v467
        %v478 = vunpack.c.h.b16 %v467
        %v479 = vunpack.c.l.b16 0
        %v480 = vunpack.c.h.b16 0
        %vm481 = vcmp.ne.s32.totalorder %v477, %v479
        %vm482 = vcmp.ne.s32.totalorder %v478, %v480
        %vm483 = vmpackc.low %vm482, %vm481
        %v484 = vsel %vm476, %v324, 0
        %v485 = vsel %vm483, %v325, 0
        %v486 = vsel %vm476, %v326, 0
        %v487 = vsel %vm483, %v327, 0
        %s488 = scalar_lea.vmem %s2, 8
        %v489 = vld [vmem:[%s488] sm:$0xf]
        %v494 = vunpack.c.l.b16 %v484
        %v495 = vunpack.c.h.b16 %v484
        %v496 = vunpack.c.l.b16 %v485
        %v497 = vunpack.c.l.b16 %v486
        %v498 = vunpack.c.h.b16 %v486
        %v499 = vunpack.c.l.b16 %v487
        %v500 = vpack.c.b16 %v497, %v494
        %v501 = vpack.c.b16 %v498, %v495
        %v502 = vpack.c.b16 %v499, %v496
        %503 = vrot.lane.b32.xlu0 %v500, 15
        %v504 = vpop.permute.xlu0 %503
        %505 = vrot.lane.b32.xlu0 %v501, 15
        %v506 = vpop.permute.xlu0 %505
        %507 = vrot.lane.b32.xlu0 %v502, 15
        %v508 = vpop.permute.xlu0 %507
        %vm509 = vcmask 121856
        %v510 = vsel %vm509, %v504, %v506
        %v511 = vsel %vm509, %v506, %v508
        %v515 = vsel %vm380, %v489, 0
        %517 = vmatpush.bf16.msra.mxu0 0
        %518 = vmatpush.bf16.msra.mxu0 0
        %519 = vmatpush.bf16.msra.mxu0 0
        %520 = vmatpush.bf16.msra.mxu0 0
        %521 = vmatpush.bf16.msra.mxu0 0
        %522 = vmatpush.bf16.msra.mxu0 0
        %523 = vmatpush.bf16.msra.mxu0 0
        %524 = vmatpush.bf16.msra.mxu0 %v510
        %525 = vmatmul.bf16.gmra.mxu0 %v515
        %v526 = vpop.f32.mrf.mxu0
        %v527 = vadd.f32 0.0, %v526
        %v528 = vpop.f32.mrf.mxu0
        %529 = vdwg.mxu0
        %530 = vmatpush.bf16.msra.mxu0 0
        %531 = vmatpush.bf16.msra.mxu0 0
        %532 = vmatpush.bf16.msra.mxu0 0
        %533 = vmatpush.bf16.msra.mxu0 0
        %534 = vmatpush.bf16.msra.mxu0 0
        %535 = vmatpush.bf16.msra.mxu0 0
        %536 = vmatpush.bf16.msra.mxu0 0
        %537 = vmatpush.bf16.msra.mxu0 %v511
        %538 = vmatmul.bf16.gmra.mxu0 %v515
        %v539 = vpop.f32.mrf.mxu0
        %v540 = vadd.f32 0.0, %v539
        %v541 = vpop.f32.mrf.mxu0
        %542 = vdwg.mxu0
        %v543 = vadd.f32 %v447, %v527
        %v544 = vadd.f32 %v460, %v540
        %545 = vrot.lane.b32.xlu0 %v329, 127
        %v546 = vpop.permute.xlu0 %545
        %v547 = vrot.slane %v546, 4
        %vm548 = vcmask 1039360
        %v549 = vsel %vm548, %v547, %v546
        %v550 = vunpack.c.l.b16 %v549
        %v551 = vunpack.c.h.b16 %v549
        %v552 = vunpack.c.l.b16 0
        %v553 = vunpack.c.h.b16 0
        %vm554 = vcmp.ne.s32.totalorder %v550, %v552
        %vm555 = vcmp.ne.s32.totalorder %v551, %v553
        %vm556 = vmpackc.low %vm555, %vm554
        %v557 = vunpack.c.l.b16 %v547
        %v558 = vunpack.c.h.b16 %v547
        %v559 = vunpack.c.l.b16 0
        %v560 = vunpack.c.h.b16 0
        %vm561 = vcmp.ne.s32.totalorder %v557, %v559
        %vm562 = vcmp.ne.s32.totalorder %v558, %v560
        %vm563 = vmpackc.low %vm562, %vm561
        %v564 = vsel %vm556, %v324, 0
        %v565 = vsel %vm563, %v325, 0
        %v566 = vsel %vm556, %v326, 0
        %v567 = vsel %vm563, %v327, 0
        %s568 = scalar_lea.vmem %s2, 12
        %v569 = vld [vmem:[%s568] sm:$0xf]
        %v574 = vunpack.c.l.b16 %v564
        %v575 = vunpack.c.h.b16 %v564
        %v576 = vunpack.c.l.b16 %v565
        %v577 = vunpack.c.l.b16 %v566
        %v578 = vunpack.c.h.b16 %v566
        %v579 = vunpack.c.l.b16 %v567
        %v580 = vpack.c.b16 %v577, %v574
        %v581 = vpack.c.b16 %v578, %v575
        %v582 = vpack.c.b16 %v579, %v576
        %583 = vrot.lane.b32.xlu0 %v580, 1
        %v584 = vpop.permute.xlu0 %583
        %585 = vrot.lane.b32.xlu0 %v581, 1
        %v586 = vpop.permute.xlu0 %585
        %587 = vrot.lane.b32.xlu0 %v582, 1
        %v588 = vpop.permute.xlu0 %587
        %vm589 = vcmask 7168
        %v590 = vsel %vm589, %v584, %v586
        %v591 = vsel %vm589, %v586, %v588
        %v595 = vsel %vm380, %v569, 0
        %597 = vmatpush.bf16.msra.mxu0 0
        %598 = vmatpush.bf16.msra.mxu0 0
        %599 = vmatpush.bf16.msra.mxu0 0
        %600 = vmatpush.bf16.msra.mxu0 0
        %601 = vmatpush.bf16.msra.mxu0 0
        %602 = vmatpush.bf16.msra.mxu0 0
        %603 = vmatpush.bf16.msra.mxu0 0
        %604 = vmatpush.bf16.msra.mxu0 %v590
        %605 = vmatmul.bf16.gmra.mxu0 %v595
        %v606 = vpop.f32.mrf.mxu0
        %v607 = vadd.f32 0.0, %v606
        %v608 = vpop.f32.mrf.mxu0
        %609 = vdwg.mxu0
        %610 = vmatpush.bf16.msra.mxu0 0
        %611 = vmatpush.bf16.msra.mxu0 0
        %612 = vmatpush.bf16.msra.mxu0 0
        %613 = vmatpush.bf16.msra.mxu0 0
        %614 = vmatpush.bf16.msra.mxu0 0
        %615 = vmatpush.bf16.msra.mxu0 0
        %616 = vmatpush.bf16.msra.mxu0 0
        %617 = vmatpush.bf16.msra.mxu0 %v591
        %618 = vmatmul.bf16.gmra.mxu0 %v595
        %v619 = vpop.f32.mrf.mxu0
        %v620 = vadd.f32 0.0, %v619
        %v621 = vpop.f32.mrf.mxu0
        %622 = vdwg.mxu0
        %v623 = vadd.f32 %v543, %v607
        %v624 = vadd.f32 %v544, %v620
        %v625 = vld [vmem:[#allocation2 + $0x4] sm:$0xff]
        %v626 = vld [vmem:[#allocation2 + $0x14] sm:$0xff]
        %s627 = scalar_lea.vmem %s2, 16
        %v628 = vld [vmem:[%s627] sm:$0xf]
        %v631 = vunpack.c.l.b16 %v625
        %v632 = vunpack.c.h.b16 %v625
        %v633 = vunpack.c.l.b16 %v626
        %v634 = vunpack.c.h.b16 %v626
        %v635 = vpack.c.b16 %v633, %v631
        %v636 = vpack.c.b16 %v634, %v632
        %v640 = vsel %vm380, %v628, 0
        %642 = vmatpush.bf16.msra.mxu0 0
        %643 = vmatpush.bf16.msra.mxu0 0
        %644 = vmatpush.bf16.msra.mxu0 0
        %645 = vmatpush.bf16.msra.mxu0 0
        %646 = vmatpush.bf16.msra.mxu0 0
        %647 = vmatpush.bf16.msra.mxu0 0
        %648 = vmatpush.bf16.msra.mxu0 0
        %649 = vmatpush.bf16.msra.mxu0 %v635
        %650 = vmatmul.bf16.gmra.mxu0 %v640
        %v651 = vpop.f32.mrf.mxu0
        %v652 = vadd.f32 0.0, %v651
        %v653 = vpop.f32.mrf.mxu0
        %654 = vdwg.mxu0
        %655 = vmatpush.bf16.msra.mxu0 0
        %656 = vmatpush.bf16.msra.mxu0 0
        %657 = vmatpush.bf16.msra.mxu0 0
        %658 = vmatpush.bf16.msra.mxu0 0
        %659 = vmatpush.bf16.msra.mxu0 0
        %660 = vmatpush.bf16.msra.mxu0 0
        %661 = vmatpush.bf16.msra.mxu0 0
        %662 = vmatpush.bf16.msra.mxu0 %v636
        %663 = vmatmul.bf16.gmra.mxu0 %v640
        %v664 = vpop.f32.mrf.mxu0
        %v665 = vadd.f32 0.0, %v664
        %v666 = vpop.f32.mrf.mxu0
        %667 = vdwg.mxu0
        %v668 = vadd.f32 %v623, %v652
        %v669 = vadd.f32 %v624, %v665
        %v670 = vld [vmem:[#allocation2 + $0x4] sm:$0xff]
        %v671 = vld [vmem:[#allocation2 + $0xc] sm:$0xf]
        %v672 = vld [vmem:[#allocation2 + $0x14] sm:$0xff]
        %v673 = vld [vmem:[#allocation2 + $0x1c] sm:$0xf]
        %674 = vrot.lane.b32.xlu0 %v464, 1
        %v675 = vpop.permute.xlu0 %674
        %v676 = vrot.slane %v675, 4
        %v677 = vsel %vm589, %v676, %v675
        %v678 = vunpack.c.l.b16 %v677
        %v679 = vunpack.c.h.b16 %v677
        %v680 = vunpack.c.l.b16 0
        %v681 = vunpack.c.h.b16 0
        %vm682 = vcmp.ne.s32.totalorder %v678, %v680
        %vm683 = vcmp.ne.s32.totalorder %v679, %v681
        %vm684 = vmpackc.low %vm683, %vm682
        %v685 = vunpack.c.l.b16 %v676
        %v686 = vunpack.c.h.b16 %v676
        %v687 = vunpack.c.l.b16 0
        %v688 = vunpack.c.h.b16 0
        %vm689 = vcmp.ne.s32.totalorder %v685, %v687
        %vm690 = vcmp.ne.s32.totalorder %v686, %v688
        %vm691 = vmpackc.low %vm690, %vm689
        %v692 = vsel %vm684, %v670, 0
        %v693 = vsel %vm691, %v671, 0
        %v694 = vsel %vm684, %v672, 0
        %v695 = vsel %vm691, %v673, 0
        %s696 = scalar_lea.vmem %s2, 20
        %v697 = vld [vmem:[%s696] sm:$0xf]
        %v702 = vunpack.c.l.b16 %v692
        %v703 = vunpack.c.h.b16 %v692
        %v704 = vunpack.c.l.b16 %v693
        %v705 = vunpack.c.l.b16 %v694
        %v706 = vunpack.c.h.b16 %v694
        %v707 = vunpack.c.l.b16 %v695
        %v708 = vpack.c.b16 %v705, %v702
        %v709 = vpack.c.b16 %v706, %v703
        %v710 = vpack.c.b16 %v707, %v704
        %711 = vrot.lane.b32.xlu0 %v708, 127
        %v712 = vpop.permute.xlu0 %711
        %713 = vrot.lane.b32.xlu0 %v709, 127
        %v714 = vpop.permute.xlu0 %713
        %715 = vrot.lane.b32.xlu0 %v710, 127
        %v716 = vpop.permute.xlu0 %715
        %v717 = vsel %vm548, %v712, %v714
        %v718 = vsel %vm548, %v714, %v716
        %v722 = vsel %vm380, %v697, 0
        %724 = vmatpush.bf16.msra.mxu0 0
        %725 = vmatpush.bf16.msra.mxu0 0
        %726 = vmatpush.bf16.msra.mxu0 0
        %727 = vmatpush.bf16.msra.mxu0 0
        %728 = vmatpush.bf16.msra.mxu0 0
        %729 = vmatpush.bf16.msra.mxu0 0
        %730 = vmatpush.bf16.msra.mxu0 0
        %731 = vmatpush.bf16.msra.mxu0 %v717
        %732 = vmatmul.bf16.gmra.mxu0 %v722
        %v733 = vpop.f32.mrf.mxu0
        %v734 = vadd.f32 0.0, %v733
        %v735 = vpop.f32.mrf.mxu0
        %736 = vdwg.mxu0
        %737 = vmatpush.bf16.msra.mxu0 0
        %738 = vmatpush.bf16.msra.mxu0 0
        %739 = vmatpush.bf16.msra.mxu0 0
        %740 = vmatpush.bf16.msra.mxu0 0
        %741 = vmatpush.bf16.msra.mxu0 0
        %742 = vmatpush.bf16.msra.mxu0 0
        %743 = vmatpush.bf16.msra.mxu0 0
        %744 = vmatpush.bf16.msra.mxu0 %v718
        %745 = vmatmul.bf16.gmra.mxu0 %v722
        %v746 = vpop.f32.mrf.mxu0
        %v747 = vadd.f32 0.0, %v746
        %v748 = vpop.f32.mrf.mxu0
        %749 = vdwg.mxu0
        %v750 = vadd.f32 %v668, %v734
        %v751 = vadd.f32 %v669, %v747
        %752 = vrot.lane.b32.xlu0 %v329, 15
        %v753 = vpop.permute.xlu0 %752
        %v754 = vrot.slane %v753, 4
        %v755 = vsel %vm509, %v754, %v753
        %v756 = vunpack.c.l.b16 %v755
        %v757 = vunpack.c.h.b16 %v755
        %v758 = vunpack.c.l.b16 0
        %v759 = vunpack.c.h.b16 0
        %vm760 = vcmp.ne.s32.totalorder %v756, %v758
        %vm761 = vcmp.ne.s32.totalorder %v757, %v759
        %vm762 = vmpackc.low %vm761, %vm760
        %v763 = vunpack.c.l.b16 %v754
        %v764 = vunpack.c.h.b16 %v754
        %v765 = vunpack.c.l.b16 0
        %v766 = vunpack.c.h.b16 0
        %vm767 = vcmp.ne.s32.totalorder %v763, %v765
        %vm768 = vcmp.ne.s32.totalorder %v764, %v766
        %vm769 = vmpackc.low %vm768, %vm767
        %v770 = vsel %vm762, %v670, 0
        %v771 = vsel %vm769, %v671, 0
        %v772 = vsel %vm762, %v672, 0
        %v773 = vsel %vm769, %v673, 0
        %s774 = scalar_lea.vmem %s2, 24
        %v775 = vld [vmem:[%s774] sm:$0xf]
        %v780 = vunpack.c.l.b16 %v770
        %v781 = vunpack.c.h.b16 %v770
        %v782 = vunpack.c.l.b16 %v771
        %v783 = vunpack.c.l.b16 %v772
        %v784 = vunpack.c.h.b16 %v772
        %v785 = vunpack.c.l.b16 %v773
        %v786 = vpack.c.b16 %v783, %v780
        %v787 = vpack.c.b16 %v784, %v781
        %v788 = vpack.c.b16 %v785, %v782
        %789 = vrot.lane.b32.xlu0 %v786, 113
        %v790 = vpop.permute.xlu0 %789
        %791 = vrot.lane.b32.xlu0 %v787, 113
        %v792 = vpop.permute.xlu0 %791
        %793 = vrot.lane.b32.xlu0 %v788, 113
        %v794 = vpop.permute.xlu0 %793
        %v795 = vsel %vm468, %v790, %v792
        %v796 = vsel %vm468, %v792, %v794
        %v800 = vsel %vm380, %v775, 0
        %802 = vmatpush.bf16.msra.mxu0 0
        %803 = vmatpush.bf16.msra.mxu0 0
        %804 = vmatpush.bf16.msra.mxu0 0
        %805 = vmatpush.bf16.msra.mxu0 0
        %806 = vmatpush.bf16.msra.mxu0 0
        %807 = vmatpush.bf16.msra.mxu0 0
        %808 = vmatpush.bf16.msra.mxu0 0
        %809 = vmatpush.bf16.msra.mxu0 %v795
        %810 = vmatmul.bf16.gmra.mxu0 %v800
        %v811 = vpop.f32.mrf.mxu0
        %v812 = vadd.f32 0.0, %v811
        %v813 = vpop.f32.mrf.mxu0
        %814 = vdwg.mxu0
        %815 = vmatpush.bf16.msra.mxu0 0
        %816 = vmatpush.bf16.msra.mxu0 0
        %817 = vmatpush.bf16.msra.mxu0 0
        %818 = vmatpush.bf16.msra.mxu0 0
        %819 = vmatpush.bf16.msra.mxu0 0
        %820 = vmatpush.bf16.msra.mxu0 0
        %821 = vmatpush.bf16.msra.mxu0 0
        %822 = vmatpush.bf16.msra.mxu0 %v796
        %823 = vmatmul.bf16.gmra.mxu0 %v800
        %v824 = vpop.f32.mrf.mxu0
        %v825 = vadd.f32 0.0, %v824
        %v826 = vpop.f32.mrf.mxu0
        %827 = vdwg.mxu0
        %v828 = vadd.f32 %v750, %v812
        %v829 = vadd.f32 %v751, %v825
        %s830 = scalar_lea.vmem %s2, 28
        %v831 = vld [vmem:[%s830] sm:$0xf]
        %v836 = vunpack.c.l.b16 %v670
        %v837 = vunpack.c.h.b16 %v670
        %v838 = vunpack.c.l.b16 %v671
        %v839 = vunpack.c.l.b16 %v672
        %v840 = vunpack.c.h.b16 %v672
        %v841 = vunpack.c.l.b16 %v673
        %v842 = vpack.c.b16 %v839, %v836
        %v843 = vpack.c.b16 %v840, %v837
        %v844 = vpack.c.b16 %v841, %v838
        %845 = vrot.lane.b32.xlu0 %v842, 112
        %v846 = vpop.permute.xlu0 %845
        %847 = vrot.lane.b32.xlu0 %v843, 112
        %v848 = vpop.permute.xlu0 %847
        %849 = vrot.lane.b32.xlu0 %v844, 112
        %v850 = vpop.permute.xlu0 %849
        %vm851 = vcmask 916480
        %v852 = vsel %vm851, %v846, %v848
        %v853 = vsel %vm851, %v848, %v850
        %v857 = vsel %vm380, %v831, 0
        %859 = vmatpush.bf16.msra.mxu0 0
        %860 = vmatpush.bf16.msra.mxu0 0
        %861 = vmatpush.bf16.msra.mxu0 0
        %862 = vmatpush.bf16.msra.mxu0 0
        %863 = vmatpush.bf16.msra.mxu0 0
        %864 = vmatpush.bf16.msra.mxu0 0
        %865 = vmatpush.bf16.msra.mxu0 0
        %866 = vmatpush.bf16.msra.mxu0 %v852
        %867 = vmatmul.bf16.gmra.mxu0 %v857
        %v868 = vpop.f32.mrf.mxu0
        %v869 = vadd.f32 0.0, %v868
        %v870 = vpop.f32.mrf.mxu0
        %871 = vdwg.mxu0
        %872 = vmatpush.bf16.msra.mxu0 0
        %873 = vmatpush.bf16.msra.mxu0 0
        %874 = vmatpush.bf16.msra.mxu0 0
        %875 = vmatpush.bf16.msra.mxu0 0
        %876 = vmatpush.bf16.msra.mxu0 0
        %877 = vmatpush.bf16.msra.mxu0 0
        %878 = vmatpush.bf16.msra.mxu0 0
        %879 = vmatpush.bf16.msra.mxu0 %v853
        %880 = vmatmul.bf16.gmra.mxu0 %v857
        %v881 = vpop.f32.mrf.mxu0
        %v882 = vadd.f32 0.0, %v881
        %v883 = vpop.f32.mrf.mxu0
        %884 = vdwg.mxu0
        %v885 = vadd.f32 %v828, %v869
        %v886 = vadd.f32 %v829, %v882
        %887 = vrot.lane.b32.xlu0 %v464, 17
        %v888 = vpop.permute.xlu0 %887
        %v889 = vrot.slane %v888, 4
        %v890 = vsel %vm429, %v889, %v888
        %v891 = vunpack.c.l.b16 %v890
        %v892 = vunpack.c.h.b16 %v890
        %v893 = vunpack.c.l.b16 0
        %v894 = vunpack.c.h.b16 0
        %vm895 = vcmp.ne.s32.totalorder %v891, %v893
        %vm896 = vcmp.ne.s32.totalorder %v892, %v894
        %vm897 = vmpackc.low %vm896, %vm895
        %v898 = vunpack.c.l.b16 %v889
        %v899 = vunpack.c.h.b16 %v889
        %v900 = vunpack.c.l.b16 0
        %v901 = vunpack.c.h.b16 0
        %vm902 = vcmp.ne.s32.totalorder %v898, %v900
        %vm903 = vcmp.ne.s32.totalorder %v899, %v901
        %vm904 = vmpackc.low %vm903, %vm902
        %v905 = vsel %vm897, %v670, 0
        %v906 = vsel %vm904, %v671, 0
        %v907 = vsel %vm897, %v672, 0
        %v908 = vsel %vm904, %v673, 0
        %s909 = scalar_lea.vmem %s2, 32
        %v910 = vld [vmem:[%s909] sm:$0xf]
        %v915 = vunpack.c.l.b16 %v905
        %v916 = vunpack.c.h.b16 %v905
        %v917 = vunpack.c.l.b16 %v906
        %v918 = vunpack.c.l.b16 %v907
        %v919 = vunpack.c.h.b16 %v907
        %v920 = vunpack.c.l.b16 %v908
        %v921 = vpack.c.b16 %v918, %v915
        %v922 = vpack.c.b16 %v919, %v916
        %v923 = vpack.c.b16 %v920, %v917
        %924 = vrot.lane.b32.xlu0 %v921, 111
        %v925 = vpop.permute.xlu0 %924
        %926 = vrot.lane.b32.xlu0 %v922, 111
        %v927 = vpop.permute.xlu0 %926
        %928 = vrot.lane.b32.xlu0 %v923, 111
        %v929 = vpop.permute.xlu0 %928
        %v930 = vsel %vm333, %v925, %v927
        %v931 = vsel %vm333, %v927, %v929
        %v935 = vsel %vm380, %v910, 0
        %937 = vmatpush.bf16.msra.mxu0 0
        %938 = vmatpush.bf16.msra.mxu0 0
        %939 = vmatpush.bf16.msra.mxu0 0
        %940 = vmatpush.bf16.msra.mxu0 0
        %941 = vmatpush.bf16.msra.mxu0 0
        %942 = vmatpush.bf16.msra.mxu0 0
        %943 = vmatpush.bf16.msra.mxu0 0
        %944 = vmatpush.bf16.msra.mxu0 %v930
        %945 = vmatmul.bf16.gmra.mxu0 %v935
        %v946 = vpop.f32.mrf.mxu0
        %v947 = vadd.f32 0.0, %v946
        %v948 = vpop.f32.mrf.mxu0
        %949 = vdwg.mxu0
        %950 = vmatpush.bf16.msra.mxu0 0
        %951 = vmatpush.bf16.msra.mxu0 0
        %952 = vmatpush.bf16.msra.mxu0 0
        %953 = vmatpush.bf16.msra.mxu0 0
        %954 = vmatpush.bf16.msra.mxu0 0
        %955 = vmatpush.bf16.msra.mxu0 0
        %956 = vmatpush.bf16.msra.mxu0 0
        %957 = vmatpush.bf16.msra.mxu0 %v931
        %958 = vmatmul.bf16.gmra.mxu0 %v935
        %v959 = vpop.f32.mrf.mxu0
        %v960 = vadd.f32 0.0, %v959
        %v961 = vpop.f32.mrf.mxu0
        %962 = vdwg.mxu0
        %v963 = vadd.f32 %v885, %v947
        %v964 = vadd.f32 %v886, %v960
        %v965 = vld [vmem:[%s3] sm:$0xff]
        %967 = vset.pattern.permute.xlu0 0
        %968 = vperm.xlu0 %967, %v965
        %v969 = vpop.permute.xlu0 %968
        %v971 = vadd.f32 %v963, %v969
        %v972 = vadd.f32 %v964, %v969
        %v973 = vmax.f32 %v971, 0.0
        %v974 = vmax.f32 %v972, 0.0
        %v975 = vpack.c.bf16 %v974, %v973
        %976 = vst [vmem:[#allocation3 + $0x4] sm:$0xff] %v975
        %v977 = vld [vmem:[#allocation3] sm:$0xff]
        %v978 = vld [vmem:[#allocation3 + $0x8] sm:$0xf]
        %v979 = vsel %vm341, %v977, 0
        %v980 = vsel %vm348, %v978, 0
        %v981 = vld [vmem:[%s4] sm:$0xf]
        %s982 = scalar_lea.vmem %s4, 4
        %v983 = vld [vmem:[%s982] sm:$0xf]
        %v986 = vunpack.c.l.b16 %v977
        %v987 = vunpack.c.h.b16 %v977
        %v988 = vunpack.c.l.b16 %v978
        %v989 = vpack.c.b16 %v986, %v986
        %v990 = vpack.c.b16 %v987, %v987
        %v991 = vpack.c.b16 %v988, %v988
        %992 = vrot.lane.b32.xlu0 %v989, 16
        %v993 = vpop.permute.xlu0 %992
        %994 = vrot.lane.b32.xlu0 %v990, 16
        %v995 = vpop.permute.xlu0 %994
        %996 = vrot.lane.b32.xlu0 %v991, 16
        %v997 = vpop.permute.xlu0 %996
        %v998 = vsel %vm375, %v993, %v995
        %v999 = vsel %vm375, %v995, %v997
        %vm1000 = vcmask 64512
        %v1002 = vsel %vm1000, %v983, 0
        %vm1004 = vcmask 1043456
        %v1006 = vsel %vm1004, %v998, 0
        %v1009 = vsel %vm1004, %v999, 0
        %1011 = vmatpush.bf16.msra.mxu0 0
        %1012 = vmatpush.bf16.msra.mxu0 0
        %1013 = vmatpush.bf16.msra.mxu0 0
        %1014 = vmatpush.bf16.msra.mxu0 0
        %1015 = vmatpush.bf16.msra.mxu0 0
        %1016 = vmatpush.bf16.msra.mxu0 0
        %1017 = vmatpush.bf16.msra.mxu0 0
        %1018 = vmatpush.bf16.msra.mxu0 %v1006
        %1019 = vmatmul.bf16.gmra.mxu0 %v1002
        %v1020 = vpop.f32.mrf.mxu0
        %v1021 = vadd.f32 0.0, %v1020
        %v1022 = vpop.f32.mrf.mxu0
        %1023 = vdwg.mxu0
        %1024 = vmatpush.bf16.msra.mxu0 0
        %1025 = vmatpush.bf16.msra.mxu0 0
        %1026 = vmatpush.bf16.msra.mxu0 0
        %1027 = vmatpush.bf16.msra.mxu0 0
        %1028 = vmatpush.bf16.msra.mxu0 0
        %1029 = vmatpush.bf16.msra.mxu0 0
        %1030 = vmatpush.bf16.msra.mxu0 0
        %1031 = vmatpush.bf16.msra.mxu0 %v1009
        %1032 = vmatmul.bf16.gmra.mxu0 %v1002
        %v1033 = vpop.f32.mrf.mxu0
        %v1034 = vadd.f32 0.0, %v1033
        %v1035 = vpop.f32.mrf.mxu0
        %1036 = vdwg.mxu0
        %v1039 = vunpack.c.l.b16 %v979
        %v1040 = vunpack.c.h.b16 %v979
        %v1041 = vunpack.c.l.b16 %v980
        %v1042 = vpack.c.b16 %v1039, %v1039
        %v1043 = vpack.c.b16 %v1040, %v1040
        %v1044 = vpack.c.b16 %v1041, %v1041
        %1045 = vrot.lane.b32.xlu0 %v1042, 17
        %v1046 = vpop.permute.xlu0 %1045
        %1047 = vrot.lane.b32.xlu0 %v1043, 17
        %v1048 = vpop.permute.xlu0 %1047
        %1049 = vrot.lane.b32.xlu0 %v1044, 17
        %v1050 = vpop.permute.xlu0 %1049
        %v1051 = vsel %vm429, %v1046, %v1048
        %v1052 = vsel %vm429, %v1048, %v1050
        %v1054 = vsel %vm1000, %v981, 0
        %v1057 = vsel %vm1004, %v1051, 0
        %v1060 = vsel %vm1004, %v1052, 0
        %1062 = vmatpush.bf16.msra.mxu0 0
        %1063 = vmatpush.bf16.msra.mxu0 0
        %1064 = vmatpush.bf16.msra.mxu0 0
        %1065 = vmatpush.bf16.msra.mxu0 0
        %1066 = vmatpush.bf16.msra.mxu0 0
        %1067 = vmatpush.bf16.msra.mxu0 0
        %1068 = vmatpush.bf16.msra.mxu0 0
        %1069 = vmatpush.bf16.msra.mxu0 %v1057
        %1070 = vmatmul.bf16.gmra.mxu0 %v1054
        %v1071 = vpop.f32.mrf.mxu0
        %v1072 = vadd.f32 %v1021, %v1071
        %v1073 = vpop.f32.mrf.mxu0
        %1074 = vdwg.mxu0
        %1075 = vmatpush.bf16.msra.mxu0 0
        %1076 = vmatpush.bf16.msra.mxu0 0
        %1077 = vmatpush.bf16.msra.mxu0 0
        %1078 = vmatpush.bf16.msra.mxu0 0
        %1079 = vmatpush.bf16.msra.mxu0 0
        %1080 = vmatpush.bf16.msra.mxu0 0
        %1081 = vmatpush.bf16.msra.mxu0 0
        %1082 = vmatpush.bf16.msra.mxu0 %v1060
        %1083 = vmatmul.bf16.gmra.mxu0 %v1054
        %v1084 = vpop.f32.mrf.mxu0
        %v1085 = vadd.f32 %v1034, %v1084
        %v1086 = vpop.f32.mrf.mxu0
        %1087 = vdwg.mxu0
        %v1088 = vsel %vm476, %v977, 0
        %v1089 = vsel %vm483, %v978, 0
        %s1090 = scalar_lea.vmem %s4, 8
        %v1091 = vld [vmem:[%s1090] sm:$0xf]
        %v1094 = vunpack.c.l.b16 %v1088
        %v1095 = vunpack.c.h.b16 %v1088
        %v1096 = vunpack.c.l.b16 %v1089
        %v1097 = vpack.c.b16 %v1094, %v1094
        %v1098 = vpack.c.b16 %v1095, %v1095
        %v1099 = vpack.c.b16 %v1096, %v1096
        %1100 = vrot.lane.b32.xlu0 %v1097, 15
        %v1101 = vpop.permute.xlu0 %1100
        %1102 = vrot.lane.b32.xlu0 %v1098, 15
        %v1103 = vpop.permute.xlu0 %1102
        %1104 = vrot.lane.b32.xlu0 %v1099, 15
        %v1105 = vpop.permute.xlu0 %1104
        %v1106 = vsel %vm509, %v1101, %v1103
        %v1107 = vsel %vm509, %v1103, %v1105
        %v1109 = vsel %vm1000, %v1091, 0
        %v1112 = vsel %vm1004, %v1106, 0
        %v1115 = vsel %vm1004, %v1107, 0
        %1117 = vmatpush.bf16.msra.mxu0 0
        %1118 = vmatpush.bf16.msra.mxu0 0
        %1119 = vmatpush.bf16.msra.mxu0 0
        %1120 = vmatpush.bf16.msra.mxu0 0
        %1121 = vmatpush.bf16.msra.mxu0 0
        %1122 = vmatpush.bf16.msra.mxu0 0
        %1123 = vmatpush.bf16.msra.mxu0 0
        %1124 = vmatpush.bf16.msra.mxu0 %v1112
        %1125 = vmatmul.bf16.gmra.mxu0 %v1109
        %v1126 = vpop.f32.mrf.mxu0
        %v1127 = vadd.f32 0.0, %v1126
        %v1128 = vpop.f32.mrf.mxu0
        %1129 = vdwg.mxu0
        %1130 = vmatpush.bf16.msra.mxu0 0
        %1131 = vmatpush.bf16.msra.mxu0 0
        %1132 = vmatpush.bf16.msra.mxu0 0
        %1133 = vmatpush.bf16.msra.mxu0 0
        %1134 = vmatpush.bf16.msra.mxu0 0
        %1135 = vmatpush.bf16.msra.mxu0 0
        %1136 = vmatpush.bf16.msra.mxu0 0
        %1137 = vmatpush.bf16.msra.mxu0 %v1115
        %1138 = vmatmul.bf16.gmra.mxu0 %v1109
        %v1139 = vpop.f32.mrf.mxu0
        %v1140 = vadd.f32 0.0, %v1139
        %v1141 = vpop.f32.mrf.mxu0
        %1142 = vdwg.mxu0
        %v1143 = vadd.f32 %v1072, %v1127
        %v1144 = vadd.f32 %v1085, %v1140
        %v1145 = vsel %vm556, %v977, 0
        %v1146 = vsel %vm563, %v978, 0
        %s1147 = scalar_lea.vmem %s4, 12
        %v1148 = vld [vmem:[%s1147] sm:$0xf]
        %v1151 = vunpack.c.l.b16 %v1145
        %v1152 = vunpack.c.h.b16 %v1145
        %v1153 = vunpack.c.l.b16 %v1146
        %v1154 = vpack.c.b16 %v1151, %v1151
        %v1155 = vpack.c.b16 %v1152, %v1152
        %v1156 = vpack.c.b16 %v1153, %v1153
        %1157 = vrot.lane.b32.xlu0 %v1154, 1
        %v1158 = vpop.permute.xlu0 %1157
        %1159 = vrot.lane.b32.xlu0 %v1155, 1
        %v1160 = vpop.permute.xlu0 %1159
        %1161 = vrot.lane.b32.xlu0 %v1156, 1
        %v1162 = vpop.permute.xlu0 %1161
        %v1163 = vsel %vm589, %v1158, %v1160
        %v1164 = vsel %vm589, %v1160, %v1162
        %v1166 = vsel %vm1000, %v1148, 0
        %v1169 = vsel %vm1004, %v1163, 0
        %v1172 = vsel %vm1004, %v1164, 0
        %1174 = vmatpush.bf16.msra.mxu0 0
        %1175 = vmatpush.bf16.msra.mxu0 0
        %1176 = vmatpush.bf16.msra.mxu0 0
        %1177 = vmatpush.bf16.msra.mxu0 0
        %1178 = vmatpush.bf16.msra.mxu0 0
        %1179 = vmatpush.bf16.msra.mxu0 0
        %1180 = vmatpush.bf16.msra.mxu0 0
        %1181 = vmatpush.bf16.msra.mxu0 %v1169
        %1182 = vmatmul.bf16.gmra.mxu0 %v1166
        %v1183 = vpop.f32.mrf.mxu0
        %v1184 = vadd.f32 0.0, %v1183
        %v1185 = vpop.f32.mrf.mxu0
        %1186 = vdwg.mxu0
        %1187 = vmatpush.bf16.msra.mxu0 0
        %1188 = vmatpush.bf16.msra.mxu0 0
        %1189 = vmatpush.bf16.msra.mxu0 0
        %1190 = vmatpush.bf16.msra.mxu0 0
        %1191 = vmatpush.bf16.msra.mxu0 0
        %1192 = vmatpush.bf16.msra.mxu0 0
        %1193 = vmatpush.bf16.msra.mxu0 0
        %1194 = vmatpush.bf16.msra.mxu0 %v1172
        %1195 = vmatmul.bf16.gmra.mxu0 %v1166
        %v1196 = vpop.f32.mrf.mxu0
        %v1197 = vadd.f32 0.0, %v1196
        %v1198 = vpop.f32.mrf.mxu0
        %1199 = vdwg.mxu0
        %v1200 = vadd.f32 %v1143, %v1184
        %v1201 = vadd.f32 %v1144, %v1197
        %v1202 = vld [vmem:[#allocation3 + $0x4] sm:$0xff]
        %s1203 = scalar_lea.vmem %s4, 16
        %v1204 = vld [vmem:[%s1203] sm:$0xf]
        %v1206 = vunpack.c.l.b16 %v1202
        %v1207 = vunpack.c.h.b16 %v1202
        %v1208 = vpack.c.b16 %v1206, %v1206
        %v1209 = vpack.c.b16 %v1207, %v1207
        %v1211 = vsel %vm1000, %v1204, 0
        %v1214 = vsel %vm1004, %v1208, 0
        %v1217 = vsel %vm1004, %v1209, 0
        %1219 = vmatpush.bf16.msra.mxu0 0
        %1220 = vmatpush.bf16.msra.mxu0 0
        %1221 = vmatpush.bf16.msra.mxu0 0
        %1222 = vmatpush.bf16.msra.mxu0 0
        %1223 = vmatpush.bf16.msra.mxu0 0
        %1224 = vmatpush.bf16.msra.mxu0 0
        %1225 = vmatpush.bf16.msra.mxu0 0
        %1226 = vmatpush.bf16.msra.mxu0 %v1214
        %1227 = vmatmul.bf16.gmra.mxu0 %v1211
        %v1228 = vpop.f32.mrf.mxu0
        %v1229 = vadd.f32 0.0, %v1228
        %v1230 = vpop.f32.mrf.mxu0
        %1231 = vdwg.mxu0
        %1232 = vmatpush.bf16.msra.mxu0 0
        %1233 = vmatpush.bf16.msra.mxu0 0
        %1234 = vmatpush.bf16.msra.mxu0 0
        %1235 = vmatpush.bf16.msra.mxu0 0
        %1236 = vmatpush.bf16.msra.mxu0 0
        %1237 = vmatpush.bf16.msra.mxu0 0
        %1238 = vmatpush.bf16.msra.mxu0 0
        %1239 = vmatpush.bf16.msra.mxu0 %v1217
        %1240 = vmatmul.bf16.gmra.mxu0 %v1211
        %v1241 = vpop.f32.mrf.mxu0
        %v1242 = vadd.f32 0.0, %v1241
        %v1243 = vpop.f32.mrf.mxu0
        %1244 = vdwg.mxu0
        %v1245 = vadd.f32 %v1200, %v1229
        %v1246 = vadd.f32 %v1201, %v1242
        %v1247 = vld [vmem:[#allocation3 + $0x4] sm:$0xff]
        %v1248 = vld [vmem:[#allocation3 + $0xc] sm:$0xf]
        %v1249 = vsel %vm684, %v1247, 0
        %v1250 = vsel %vm691, %v1248, 0
        %s1251 = scalar_lea.vmem %s4, 20
        %v1252 = vld [vmem:[%s1251] sm:$0xf]
        %v1255 = vunpack.c.l.b16 %v1249
        %v1256 = vunpack.c.h.b16 %v1249
        %v1257 = vunpack.c.l.b16 %v1250
        %v1258 = vpack.c.b16 %v1255, %v1255
        %v1259 = vpack.c.b16 %v1256, %v1256
        %v1260 = vpack.c.b16 %v1257, %v1257
        %1261 = vrot.lane.b32.xlu0 %v1258, 127
        %v1262 = vpop.permute.xlu0 %1261
        %1263 = vrot.lane.b32.xlu0 %v1259, 127
        %v1264 = vpop.permute.xlu0 %1263
        %1265 = vrot.lane.b32.xlu0 %v1260, 127
        %v1266 = vpop.permute.xlu0 %1265
        %v1267 = vsel %vm548, %v1262, %v1264
        %v1268 = vsel %vm548, %v1264, %v1266
        %v1270 = vsel %vm1000, %v1252, 0
        %v1273 = vsel %vm1004, %v1267, 0
        %v1276 = vsel %vm1004, %v1268, 0
        %1278 = vmatpush.bf16.msra.mxu0 0
        %1279 = vmatpush.bf16.msra.mxu0 0
        %1280 = vmatpush.bf16.msra.mxu0 0
        %1281 = vmatpush.bf16.msra.mxu0 0
        %1282 = vmatpush.bf16.msra.mxu0 0
        %1283 = vmatpush.bf16.msra.mxu0 0
        %1284 = vmatpush.bf16.msra.mxu0 0
        %1285 = vmatpush.bf16.msra.mxu0 %v1273
        %1286 = vmatmul.bf16.gmra.mxu0 %v1270
        %v1287 = vpop.f32.mrf.mxu0
        %v1288 = vadd.f32 0.0, %v1287
        %v1289 = vpop.f32.mrf.mxu0
        %1290 = vdwg.mxu0
        %1291 = vmatpush.bf16.msra.mxu0 0
        %1292 = vmatpush.bf16.msra.mxu0 0
        %1293 = vmatpush.bf16.msra.mxu0 0
        %1294 = vmatpush.bf16.msra.mxu0 0
        %1295 = vmatpush.bf16.msra.mxu0 0
        %1296 = vmatpush.bf16.msra.mxu0 0
        %1297 = vmatpush.bf16.msra.mxu0 0
        %1298 = vmatpush.bf16.msra.mxu0 %v1276
        %1299 = vmatmul.bf16.gmra.mxu0 %v1270
        %v1300 = vpop.f32.mrf.mxu0
        %v1301 = vadd.f32 0.0, %v1300
        %v1302 = vpop.f32.mrf.mxu0
        %1303 = vdwg.mxu0
        %v1304 = vadd.f32 %v1245, %v1288
        %v1305 = vadd.f32 %v1246, %v1301
        %v1306 = vsel %vm762, %v1247, 0
        %v1307 = vsel %vm769, %v1248, 0
        %s1308 = scalar_lea.vmem %s4, 24
        %v1309 = vld [vmem:[%s1308] sm:$0xf]
        %v1312 = vunpack.c.l.b16 %v1306
        %v1313 = vunpack.c.h.b16 %v1306
        %v1314 = vunpack.c.l.b16 %v1307
        %v1315 = vpack.c.b16 %v1312, %v1312
        %v1316 = vpack.c.b16 %v1313, %v1313
        %v1317 = vpack.c.b16 %v1314, %v1314
        %1318 = vrot.lane.b32.xlu0 %v1315, 113
        %v1319 = vpop.permute.xlu0 %1318
        %1320 = vrot.lane.b32.xlu0 %v1316, 113
        %v1321 = vpop.permute.xlu0 %1320
        %1322 = vrot.lane.b32.xlu0 %v1317, 113
        %v1323 = vpop.permute.xlu0 %1322
        %v1324 = vsel %vm468, %v1319, %v1321
        %v1325 = vsel %vm468, %v1321, %v1323
        %v1327 = vsel %vm1000, %v1309, 0
        %v1330 = vsel %vm1004, %v1324, 0
        %v1333 = vsel %vm1004, %v1325, 0
        %1335 = vmatpush.bf16.msra.mxu0 0
        %1336 = vmatpush.bf16.msra.mxu0 0
        %1337 = vmatpush.bf16.msra.mxu0 0
        %1338 = vmatpush.bf16.msra.mxu0 0
        %1339 = vmatpush.bf16.msra.mxu0 0
        %1340 = vmatpush.bf16.msra.mxu0 0
        %1341 = vmatpush.bf16.msra.mxu0 0
        %1342 = vmatpush.bf16.msra.mxu0 %v1330
        %1343 = vmatmul.bf16.gmra.mxu0 %v1327
        %v1344 = vpop.f32.mrf.mxu0
        %v1345 = vadd.f32 0.0, %v1344
        %v1346 = vpop.f32.mrf.mxu0
        %1347 = vdwg.mxu0
        %1348 = vmatpush.bf16.msra.mxu0 0
        %1349 = vmatpush.bf16.msra.mxu0 0
        %1350 = vmatpush.bf16.msra.mxu0 0
        %1351 = vmatpush.bf16.msra.mxu0 0
        %1352 = vmatpush.bf16.msra.mxu0 0
        %1353 = vmatpush.bf16.msra.mxu0 0
        %1354 = vmatpush.bf16.msra.mxu0 0
        %1355 = vmatpush.bf16.msra.mxu0 %v1333
        %1356 = vmatmul.bf16.gmra.mxu0 %v1327
        %v1357 = vpop.f32.mrf.mxu0
        %v1358 = vadd.f32 0.0, %v1357
        %v1359 = vpop.f32.mrf.mxu0
        %1360 = vdwg.mxu0
        %v1361 = vadd.f32 %v1304, %v1345
        %v1362 = vadd.f32 %v1305, %v1358
        %s1363 = scalar_lea.vmem %s4, 28
        %v1364 = vld [vmem:[%s1363] sm:$0xf]
        %v1367 = vunpack.c.l.b16 %v1247
        %v1368 = vunpack.c.h.b16 %v1247
        %v1369 = vunpack.c.l.b16 %v1248
        %v1370 = vpack.c.b16 %v1367, %v1367
        %v1371 = vpack.c.b16 %v1368, %v1368
        %v1372 = vpack.c.b16 %v1369, %v1369
        %1373 = vrot.lane.b32.xlu0 %v1370, 112
        %v1374 = vpop.permute.xlu0 %1373
        %1375 = vrot.lane.b32.xlu0 %v1371, 112
        %v1376 = vpop.permute.xlu0 %1375
        %1377 = vrot.lane.b32.xlu0 %v1372, 112
        %v1378 = vpop.permute.xlu0 %1377
        %v1379 = vsel %vm851, %v1374, %v1376
        %v1380 = vsel %vm851, %v1376, %v1378
        %v1382 = vsel %vm1000, %v1364, 0
        %v1385 = vsel %vm1004, %v1379, 0
        %v1388 = vsel %vm1004, %v1380, 0
        %1390 = vmatpush.bf16.msra.mxu0 0
        %1391 = vmatpush.bf16.msra.mxu0 0
        %1392 = vmatpush.bf16.msra.mxu0 0
        %1393 = vmatpush.bf16.msra.mxu0 0
        %1394 = vmatpush.bf16.msra.mxu0 0
        %1395 = vmatpush.bf16.msra.mxu0 0
        %1396 = vmatpush.bf16.msra.mxu0 0
        %1397 = vmatpush.bf16.msra.mxu0 %v1385
        %1398 = vmatmul.bf16.gmra.mxu0 %v1382
        %v1399 = vpop.f32.mrf.mxu0
        %v1400 = vadd.f32 0.0, %v1399
        %v1401 = vpop.f32.mrf.mxu0
        %1402 = vdwg.mxu0
        %1403 = vmatpush.bf16.msra.mxu0 0
        %1404 = vmatpush.bf16.msra.mxu0 0
        %1405 = vmatpush.bf16.msra.mxu0 0
        %1406 = vmatpush.bf16.msra.mxu0 0
        %1407 = vmatpush.bf16.msra.mxu0 0
        %1408 = vmatpush.bf16.msra.mxu0 0
        %1409 = vmatpush.bf16.msra.mxu0 0
        %1410 = vmatpush.bf16.msra.mxu0 %v1388
        %1411 = vmatmul.bf16.gmra.mxu0 %v1382
        %v1412 = vpop.f32.mrf.mxu0
        %v1413 = vadd.f32 0.0, %v1412
        %v1414 = vpop.f32.mrf.mxu0
        %1415 = vdwg.mxu0
        %v1416 = vadd.f32 %v1361, %v1400
        %v1417 = vadd.f32 %v1362, %v1413
        %v1418 = vsel %vm897, %v1247, 0
        %v1419 = vsel %vm904, %v1248, 0
        %s1420 = scalar_lea.vmem %s4, 32
        %v1421 = vld [vmem:[%s1420] sm:$0xf]
        %v1424 = vunpack.c.l.b16 %v1418
        %v1425 = vunpack.c.h.b16 %v1418
        %v1426 = vunpack.c.l.b16 %v1419
        %v1427 = vpack.c.b16 %v1424, %v1424
        %v1428 = vpack.c.b16 %v1425, %v1425
        %v1429 = vpack.c.b16 %v1426, %v1426
        %1430 = vrot.lane.b32.xlu0 %v1427, 111
        %v1431 = vpop.permute.xlu0 %1430
        %1432 = vrot.lane.b32.xlu0 %v1428, 111
        %v1433 = vpop.permute.xlu0 %1432
        %1434 = vrot.lane.b32.xlu0 %v1429, 111
        %v1435 = vpop.permute.xlu0 %1434
        %v1436 = vsel %vm333, %v1431, %v1433
        %v1437 = vsel %vm333, %v1433, %v1435
        %v1439 = vsel %vm1000, %v1421, 0
        %v1442 = vsel %vm1004, %v1436, 0
        %v1445 = vsel %vm1004, %v1437, 0
        %1447 = vmatpush.bf16.msra.mxu0 0
        %1448 = vmatpush.bf16.msra.mxu0 0
        %1449 = vmatpush.bf16.msra.mxu0 0
        %1450 = vmatpush.bf16.msra.mxu0 0
        %1451 = vmatpush.bf16.msra.mxu0 0
        %1452 = vmatpush.bf16.msra.mxu0 0
        %1453 = vmatpush.bf16.msra.mxu0 0
        %1454 = vmatpush.bf16.msra.mxu0 %v1442
        %1455 = vmatmul.bf16.gmra.mxu0 %v1439
        %v1456 = vpop.f32.mrf.mxu0
        %v1457 = vadd.f32 0.0, %v1456
        %v1458 = vpop.f32.mrf.mxu0
        %1459 = vdwg.mxu0
        %1460 = vmatpush.bf16.msra.mxu0 0
        %1461 = vmatpush.bf16.msra.mxu0 0
        %1462 = vmatpush.bf16.msra.mxu0 0
        %1463 = vmatpush.bf16.msra.mxu0 0
        %1464 = vmatpush.bf16.msra.mxu0 0
        %1465 = vmatpush.bf16.msra.mxu0 0
        %1466 = vmatpush.bf16.msra.mxu0 0
        %1467 = vmatpush.bf16.msra.mxu0 %v1445
        %1468 = vmatmul.bf16.gmra.mxu0 %v1439
        %v1469 = vpop.f32.mrf.mxu0
        %v1470 = vadd.f32 0.0, %v1469
        %v1471 = vpop.f32.mrf.mxu0
        %1472 = vdwg.mxu0
        %v1473 = vadd.f32 %v1416, %v1457
        %v1474 = vadd.f32 %v1417, %v1470
        %v1475 = vld [vmem:[%s5] sm:$0xff]
        %1477 = vset.pattern.permute.xlu0 0
        %1478 = vperm.xlu0 %1477, %v1475
        %v1479 = vpop.permute.xlu0 %1478
        %v1481 = vadd.f32 %v1473, %v1479
        %v1482 = vadd.f32 %v1474, %v1479
        %v1483 = vmax.f32 %v1481, 0.0
        %v1484 = vmax.f32 %v1482, 0.0
        %1485 = vst [vmem:[%s259] sm:$0xff] %v1483
        %1486 = vst [vmem:[%s259 + $0x8] sm:$0xff] %v1484
        %s1487 = sand.u32 %s164, 1
        %s1488 = scalar_lea.sflag [#allocation5], %s1487
        %s1489 = sand.u32 %s164, 1
        %s1490 = smul.addr %s1489, 16
        %s1491 = scalar_lea.vmem [#allocation4], %s1490
        // Predicated region
        $region45: #{tpu_custom_call.1} parent=43 // pred_check
          %p1492 = pneg %p174
        $region46: #{tpu_custom_call.1} parent=43 // pred_check_branch
          %1494 = sbr.rel (%p1492) target = $region48
        $region47: #{tpu_custom_call.1} parent=43 // pred_region
          %1496 = vsyncadd %s1488, 0
          %s1497 = smul.addr %s20, 2
          %s1498 = smul.addr %s1497, 8
          %s1499 = scalar_lea.hbm %s6, %s1498
          %s1501 = sshll.u32 %s1491, 4
          %s1502 = int_to_ptr.vmem [resolvable:$true] %s1501
          %s1503 = sshll.u32 %s1499, 4
          %s1504 = int_to_ptr.hbm [resolvable:$true] %s1503
          %1506 = dma.vmem_to_hbm [thread:$0]  %s1502, 256, %s1504, %s1488
        $region48: #{tpu_custom_call.1} parent=43 // pred_fallthru
          _
      $region44: #{tpu_custom_call.1} parent=5 // pred_fallthru
        _
      %p1507 = scmp.le.s32.totalorder 2, %s15
      // Predicated region
      $region49: #{tpu_custom_call.1} parent=5 // pred_check
        %p1508 = pneg %p1507
      $region50: #{tpu_custom_call.1} parent=5 // pred_check_branch
        %1510 = sbr.rel (%p1508) target = $region52
      $region51: #{tpu_custom_call.1} parent=5 // pred_region
        %s1511 = ssub.s32 %s15, 2
        // Predicated region
        $region53: #{tpu_custom_call.1} parent=51 // pred_check
          %p1512 = pneg %p180
        $region54: #{tpu_custom_call.1} parent=51 // pred_check_branch
          %1514 = sbr.rel (%p1512) target = $region56
        $region55: #{tpu_custom_call.1} parent=51 // pred_region
          %s1515 = sand.u32 %s165, 1
          %s1516 = scalar_lea.sflag [#allocation5], %s1515
          %s1517 = sand.u32 %s165, 1
          %s1518 = smul.addr %s1517, 16
          %s1519 = scalar_lea.vmem [#allocation4], %s1518
          %1521 = dma.done %s1516, 256
        $region56: #{tpu_custom_call.1} parent=51 // pred_fallthru
          _
      $region52: #{tpu_custom_call.1} parent=5 // pred_fallthru
        _
    $region6: #{tpu_custom_call.1} parent=1 // loop_footer
      %s19 = sadd.s32 1, %s15
    $region7: #{tpu_custom_call.1} parent=1 // loop_footer_branch
      %14 = sbr.rel target = $region3
    $region8: #{tpu_custom_call.1} parent=1 // loop_exit
      _
    %1522 = vsyncpa [#allocation5], 1
    %s1523 = scalar_lea.sflag [#allocation5], 1
    %1524 = vsyncpa %s1523, 1

</llo_original>
